<compile_context>
chip_gen: v7x
topology: tpu7x:2x2x1
jax: 0.10.0
libtpu: 0.0.40
codegen_flags: <defaults>
</compile_context>

<pallas_src>
import functools
import math

import jax
import jax.numpy as jnp
from jax import lax
from jax.experimental import pallas as pl
from jax.experimental.pallas import tpu as pltpu

D_LANE = 128  # TPU lane width: pad feature dims to a multiple of this


def _round_up(x, m):
    return ((x + m - 1) // m) * m


# ----------------------------------------------------------------------------
# Fused Pallas kernel: all GIN layers + virtual-node updates in one call
# ----------------------------------------------------------------------------
def _fused_gnn_kernel(h0_ref, gmat_ref, cmat_ref, bmat_ref, ea_ref,
                      w1_ref, b1_ref, w2_ref, b2_ref,
                      vw1_ref, vb1_ref, vw2_ref, vb2_ref,
                      h_out_ref,
                      hin_ref, aggr_ref, vn_ref,
                      *, num_layer, eps):
    """grid = (layer, edge_tile); both axes 'arbitrary' (stateful).

    h0_ref   : [N, Dp]   initial node features (resident, read once)
    gmat_ref : [TE, N]   bf16 one-hot(edge_index[0]) tile  (source gather)
    cmat_ref : [TE, N]   bf16 one-hot(edge_index[1]) tile  (target scatter)
    bmat_ref : [N, G]    bf16 one-hot(batch)               (resident)
    ea_ref   : [TE, 1]   edge attributes (broadcast over lanes in-kernel)
    w*/b*    : [1, ., .] per-layer GIN-MLP weights (BN folded)
    vw*/vb*  : [1, ., .] per-layer virtual-node-MLP weights (BN folded)
    h_out_ref: [N, Dp]   node state; doubles as the kernel output (resident)
    hin_ref  : [N, Dp]   scratch: h + vn[batch] for the current layer
    aggr_ref : [N, Dp]   scratch: scatter-add accumulator over edge tiles
    vn_ref   : [G, Dp]   scratch: virtual-node embeddings
    """
    f32 = jnp.float32
    bf16 = jnp.bfloat16
    l = pl.program_id(0)
    et = pl.program_id(1)
    n_et = pl.num_programs(1)

    # ---- one-time init: node state <- encoded features, virtual node <- 0 ----
    @pl.when(jnp.logical_and(l == 0, et == 0))
    def _():
        h_out_ref[...] = h0_ref[...]
        vn_ref[...] = jnp.zeros_like(vn_ref)

    # ---- per-layer init: hin = h (+ vn[batch] for l > 0), zero accumulator ----
    @pl.when(et == 0)
    def _():
        hin_ref[...] = h_out_ref[...]
        aggr_ref[...] = jnp.zeros_like(aggr_ref)

    @pl.when(jnp.logical_and(et == 0, l > 0))      # vn == 0 at layer 0: skip dot
    def _():
        vnb = jnp.dot(bmat_ref[...], vn_ref[...].astype(bf16),
                      preferred_element_type=f32)                      # [N, Dp]
        hin_ref[...] = hin_ref[...] + vnb

    # ---- message passing for this edge tile (accumulated over tiles) ----
    hin_b = hin_ref[...].astype(bf16)
    xj = jnp.dot(gmat_ref[...], hin_b, preferred_element_type=f32)     # [TE, Dp]
    msg = jnp.maximum(xj + ea_ref[...], 0.0)                           # relu(x_j + e)
    # scatter-add: contract the edge axis directly (no transposed operand)
    aggr_ref[...] += lax.dot_general(
        cmat_ref[...], msg.astype(bf16),
        dimension_numbers=(((0,), (0,)), ((), ())),
        preferred_element_type=f32)                                    # [N, Dp]

    # ---- layer epilogue: GIN MLP (+folded BNs), optional ReLU, VN update ----
    @pl.when(et == n_et - 1)
    def _():
        hin = hin_ref[...]
        z = (1.0 + eps) * hin + aggr_ref[...]
        z1 = jnp.maximum(
            jnp.dot(z.astype(bf16), w1_ref[0], preferred_element_type=f32)
            + b1_ref[0], 0.0)
        h_new = (jnp.dot(z1.astype(bf16), w2_ref[0], preferred_element_type=f32)
                 + b2_ref[0])

        @pl.when(l == num_layer - 1)               # last layer: no ReLU, no VN
        def _():
            h_out_ref[...] = h_new

        @pl.when(l < num_layer - 1)
        def _():
            h_out_ref[...] = jnp.maximum(h_new, 0.0)
            # virtual-node update uses hin (= h_list[layer] after the vn add)
            pooled = lax.dot_general(
                bmat_ref[...], hin.astype(bf16),
                dimension_numbers=(((0,), (0,)), ((), ())),
                preferred_element_type=f32)                            # [G, Dp]
            vt = pooled + vn_ref[...]
            t1 = jnp.maximum(
                jnp.dot(vt.astype(bf16), vw1_ref[0], preferred_element_type=f32)
                + vb1_ref[0], 0.0)
            t2 = (jnp.dot(t1.astype(bf16), vw2_ref[0], preferred_element_type=f32)
                  + vb2_ref[0])
            vn_ref[...] = jnp.maximum(t2, 0.0)


# ----------------------------------------------------------------------------
# Parameter construction: torch-init Linears, eval-mode BN folded, lane-padded
# ----------------------------------------------------------------------------
def _linear_params(key, fan_in, fan_out):
    k1, k2 = jax.random.split(key)
    bound = 1.0 / math.sqrt(fan_in)
    w = jax.random.uniform(k1, (fan_in, fan_out), jnp.float32, -bound, bound)
    b = jax.random.uniform(k2, (fan_out,), jnp.float32, -bound, bound)
    return w, b


def _bn_eval_scale_shift(dim):
    # Freshly initialized BatchNorm1d in eval: gamma=1, beta=0, mean=0, var=1
    gamma = jnp.ones((dim,), jnp.float32)
    beta = jnp.zeros((dim,), jnp.float32)
    mean = jnp.zeros((dim,), jnp.float32)
    var = jnp.ones((dim,), jnp.float32)
    scale = gamma / jnp.sqrt(var + 1e-5)
    shift = beta - mean * scale
    return scale, shift


def _fold_bn(w, b, scale, shift):
    return w * scale[None, :], b * scale + shift


def _pad2(a, rows, cols):
    out = jnp.zeros((rows, cols), a.dtype)
    return out.at[:a.shape[0], :a.shape[1]].set(a)


def make_params(key, num_layer, emb_dim):
    """Stacked [L, ...] BN-folded, zero-padded (to 128-lane) f32 parameters."""
    D, H = emb_dim, 2 * emb_dim
    Dp, Hp = _round_up(D, D_LANE), _round_up(H, D_LANE)
    keys = jax.random.split(key, 2 * num_layer + 2 * (num_layer - 1))
    ki = 0

    w1s, b1s, w2s, b2s = [], [], [], []
    for _ in range(num_layer):
        w1, b1 = _linear_params(keys[ki], D, H); ki += 1
        w1, b1 = _fold_bn(w1, b1, *_bn_eval_scale_shift(H))   # GIN-MLP inner BN
        w2, b2 = _linear_params(keys[ki], H, D); ki += 1
        w2, b2 = _fold_bn(w2, b2, *_bn_eval_scale_shift(D))   # outer batch_norms[layer]
        w1s.append(_pad2(w1, Dp, Hp)); b1s.append(_pad2(b1[None, :], 1, Hp))
        w2s.append(_pad2(w2, Hp, Dp)); b2s.append(_pad2(b2[None, :], 1, Dp))

    vw1s, vb1s, vw2s, vb2s = [], [], [], []
    for _ in range(num_layer - 1):
        w1, b1 = _linear_params(keys[ki], D, H); ki += 1
        w1, b1 = _fold_bn(w1, b1, *_bn_eval_scale_shift(H))
        w2, b2 = _linear_params(keys[ki], H, D); ki += 1
        w2, b2 = _fold_bn(w2, b2, *_bn_eval_scale_shift(D))
        vw1s.append(_pad2(w1, Dp, Hp)); vb1s.append(_pad2(b1[None, :], 1, Hp))
        vw2s.append(_pad2(w2, Hp, Dp)); vb2s.append(_pad2(b2[None, :], 1, Dp))
    # pad the VN stack to num_layer entries; the last entry is gated off in-kernel
    vw1s.append(jnp.zeros((Dp, Hp), jnp.float32))
    vb1s.append(jnp.zeros((1, Hp), jnp.float32))
    vw2s.append(jnp.zeros((Hp, Dp), jnp.float32))
    vb2s.append(jnp.zeros((1, Dp), jnp.float32))

    return dict(
        w1=jnp.stack(w1s), b1=jnp.stack(b1s), w2=jnp.stack(w2s), b2=jnp.stack(b2s),
        vw1=jnp.stack(vw1s), vb1=jnp.stack(vb1s),
        vw2=jnp.stack(vw2s), vb2=jnp.stack(vb2s))


# ----------------------------------------------------------------------------
# Forward (all layers in one pallas_call)
# ----------------------------------------------------------------------------
def gnn_node_virtualnode_forward(x, edge_index, edge_attr, batch,
                                 params, num_layer, emb_dim, num_graphs):
    D = emb_dim
    Dp, Hp = params["w1"].shape[1], params["w1"].shape[2]
    N = x.shape[0]
    E = edge_attr.shape[0]
    G = num_graphs
    bf16 = jnp.bfloat16

    # x = x.long(); node_encoder = identity  -> integer-valued float features
    h0 = jnp.zeros((N, Dp), jnp.float32).at[:, :D].set(
        x.astype(jnp.int32).astype(jnp.float32))
    # edge_attr = edge_attr.long(); edge_encoder = identity; keep [E, 1]
    ea = edge_attr.astype(jnp.int32).astype(jnp.float32)

    # Edge tiling: pad E; padded edges get out-of-range indices -> all-zero
    # one-hot rows and zero edge_attr, so they contribute nothing.
    TE = 256
    E_pad = _round_up(E, 8)
    if E_pad <= TE:
        TE = E_pad
    else:
        E_pad = _round_up(E, TE)
    n_et = E_pad // TE

    row = jnp.full((E_pad,), N, jnp.int32).at[:E].set(edge_index[0].astype(jnp.int32))
    col = jnp.full((E_pad,), N, jnp.int32).at[:E].set(edge_index[1].astype(jnp.int32))
    ea_p = jnp.zeros((E_pad, 1), jnp.float32).at[:E].set(ea)

    gmat = jax.nn.one_hot(row, N, dtype=bf16)      # [E_pad, N]  gather of x[row]
    cmat = jax.nn.one_hot(col, N, dtype=bf16)      # [E_pad, N]  scatter-add to col
    bmat = jax.nn.one_hot(batch, G, dtype=bf16)    # [N, G]

    kernel = functools.partial(_fused_gnn_kernel, num_layer=num_layer, eps=0.0)

    out = pl.pallas_call(
        kernel,
        out_shape=jax.ShapeDtypeStruct((N, Dp), jnp.float32),
        grid=(num_layer, n_et),
        in_specs=[
            pl.BlockSpec((N, Dp), lambda l, e: (0, 0)),        # h0 (resident)
            pl.BlockSpec((TE, N), lambda l, e: (e, 0)),        # gmat tile
            pl.BlockSpec((TE, N), lambda l, e: (e, 0)),        # cmat tile
            pl.BlockSpec((N, G), lambda l, e: (0, 0)),         # bmat (resident)
            pl.BlockSpec((TE, 1), lambda l, e: (e, 0)),        # edge_attr tile
            pl.BlockSpec((1, Dp, Hp), lambda l, e: (l, 0, 0)),  # w1
            pl.BlockSpec((1, 1, Hp), lambda l, e: (l, 0, 0)),   # b1
            pl.BlockSpec((1, Hp, Dp), lambda l, e: (l, 0, 0)),  # w2
            pl.BlockSpec((1, 1, Dp), lambda l, e: (l, 0, 0)),   # b2
            pl.BlockSpec((1, Dp, Hp), lambda l, e: (l, 0, 0)),  # vw1
            pl.BlockSpec((1, 1, Hp), lambda l, e: (l, 0, 0)),   # vb1
            pl.BlockSpec((1, Hp, Dp), lambda l, e: (l, 0, 0)),  # vw2
            pl.BlockSpec((1, 1, Dp), lambda l, e: (l, 0, 0)),   # vb2
        ],
        out_specs=pl.BlockSpec((N, Dp), lambda l, e: (0, 0)),   # h state / output
        scratch_shapes=[
            pltpu.VMEM((N, Dp), jnp.float32),   # hin
            pltpu.VMEM((N, Dp), jnp.float32),   # aggr accumulator
            pltpu.VMEM((G, Dp), jnp.float32),   # virtual-node state
        ],
        compiler_params=pltpu.CompilerParams(
            dimension_semantics=("arbitrary", "arbitrary")),
    )(h0, gmat, cmat, bmat, ea_p,
      params["w1"].astype(bf16), params["b1"],
      params["w2"].astype(bf16), params["b2"],
      params["vw1"].astype(bf16), params["vb1"],
      params["vw2"].astype(bf16), params["vb2"])

    return out[:, :D]


# ----------------------------------------------------------------------------
# Pure-JAX f32 reference (same folded/padded params) for a tolerance check
# ----------------------------------------------------------------------------
def reference_forward(x, edge_index, edge_attr, batch,
                      params, num_layer, emb_dim, num_graphs):
    D = emb_dim
    Dp = params["w1"].shape[1]
    N = x.shape[0]
    h = jnp.zeros((N, Dp), jnp.float32).at[:, :D].set(
        x.astype(jnp.int32).astype(jnp.float32))
    ea = edge_attr.astype(jnp.int32).astype(jnp.float32)
    row, col = edge_index[0], edge_index[1]
    gmat = jax.nn.one_hot(row, N, dtype=jnp.float32)
    cmat = jax.nn.one_hot(col, N, dtype=jnp.float32)
    bmat = jax.nn.one_hot(batch, num_graphs, dtype=jnp.float32)
    vn = jnp.zeros((num_graphs, Dp), jnp.float32)
    for l in range(num_layer):
        hin = h + bmat @ vn
        msg = jnp.maximum(gmat @ hin + ea, 0.0)
        aggr = cmat.T @ msg
        z = hin + aggr
        z1 = jnp.maximum(z @ params["w1"][l] + params["b1"][l], 0.0)
        hn = z1 @ params["w2"][l] + params["b2"][l]
        if l < num_layer - 1:
            hn = jnp.maximum(hn, 0.0)
            vt = bmat.T @ hin + vn
            t1 = jnp.maximum(vt @ params["vw1"][l] + params["vb1"][l], 0.0)
            vn = jnp.maximum(t1 @ params["vw2"][l] + params["vb2"][l], 0.0)
        h = hn
    return h[:, :D]


# ----------------------------------------------------------------------------
if __name__ == "__main__":
    key = jax.random.PRNGKey(0)
    num_layer = 3
    emb_dim = 32
    N, E, G = 16, 32, 2

    kx, ke, kei, kp = jax.random.split(key, 4)
    x = jax.random.randint(kx, (N, emb_dim), 0, 5).astype(jnp.float32)
    edge_attr = jax.random.randint(ke, (E, 1), 0, 3).astype(jnp.float32)
    edge_index = jax.random.randint(kei, (2, E), 0, N).astype(jnp.int32)
    batch = jnp.concatenate([jnp.zeros(N // 2, jnp.int32),
                             jnp.ones(N // 2, jnp.int32)])

    params = make_params(kp, num_layer, emb_dim)

    out = gnn_node_virtualnode_forward(x, edge_index, edge_attr, batch,
                                       params, num_layer, emb_dim, G)
    out = jax.block_until_ready(out)

    ref = reference_forward(x, edge_index, edge_attr, batch,
                            params, num_layer, emb_dim, G)
    assert out.shape == (N, emb_dim)
    assert bool(jnp.all(jnp.isfinite(out)))
    err = float(jnp.max(jnp.abs(out - ref)))
    scale = float(jnp.max(jnp.abs(ref))) + 1e-6
    assert err <= 5e-2 * scale + 1e-3, (err, scale)   # bf16 MXU tolerance
    print("KERNEL_OK")
</pallas_src>

<mosaic_0001>
module attributes {stable_mosaic.version = 11 : i64} {
  func.func @_fused_gnn_kernel(%arg0: i32, %arg1: i32, %arg2: memref<16x128xf32, #tpu.memory_space<vmem>>, %arg3: memref<32x16xbf16, #tpu.memory_space<vmem>>, %arg4: memref<32x16xbf16, #tpu.memory_space<vmem>>, %arg5: memref<16x2xbf16, #tpu.memory_space<vmem>>, %arg6: memref<32x1xf32, #tpu.memory_space<vmem>>, %arg7: memref<1x128x128xbf16, #tpu.memory_space<vmem>>, %arg8: memref<1x1x128xf32, #tpu.memory_space<vmem>>, %arg9: memref<1x128x128xbf16, #tpu.memory_space<vmem>>, %arg10: memref<1x1x128xf32, #tpu.memory_space<vmem>>, %arg11: memref<1x128x128xbf16, #tpu.memory_space<vmem>>, %arg12: memref<1x1x128xf32, #tpu.memory_space<vmem>>, %arg13: memref<1x128x128xbf16, #tpu.memory_space<vmem>>, %arg14: memref<1x1x128xf32, #tpu.memory_space<vmem>>, %arg15: memref<16x128xf32, #tpu.memory_space<vmem>>, %arg16: memref<16x128xf32, #tpu.memory_space<vmem>>, %arg17: memref<16x128xf32, #tpu.memory_space<vmem>>, %arg18: memref<2x128xf32, #tpu.memory_space<vmem>>) attributes {dimension_semantics = [#tpu.dimension_semantics<arbitrary>, #tpu.dimension_semantics<arbitrary>], iteration_bounds = array<i64: 3, 1>, scalar_prefetch = 0 : i64, scratch_operands = 3 : i64, tpu.core_type = #tpu.core_type<tc>, window_params = [{pipeline_mode = #tpu.pipeline_mode<synchronous>, transform_indices = @transform_0, window_bounds = array<i64: 16, 128>}, {transform_indices = @transform_1, window_bounds = array<i64: 32, 16>}, {transform_indices = @transform_2, window_bounds = array<i64: 32, 16>}, {pipeline_mode = #tpu.pipeline_mode<synchronous>, transform_indices = @transform_3, window_bounds = array<i64: 16, 2>}, {transform_indices = @transform_4, window_bounds = array<i64: 32, 1>}, {transform_indices = @transform_5, window_bounds = array<i64: 1, 128, 128>}, {transform_indices = @transform_6, window_bounds = array<i64: 1, 1, 128>}, {transform_indices = @transform_7, window_bounds = array<i64: 1, 128, 128>}, {transform_indices = @transform_8, window_bounds = array<i64: 1, 1, 128>}, {transform_indices = @transform_9, window_bounds = array<i64: 1, 128, 128>}, {transform_indices = @transform_10, window_bounds = array<i64: 1, 1, 128>}, {transform_indices = @transform_11, window_bounds = array<i64: 1, 128, 128>}, {transform_indices = @transform_12, window_bounds = array<i64: 1, 1, 128>}, {pipeline_mode = #tpu.pipeline_mode<synchronous>, transform_indices = @transform_13, window_bounds = array<i64: 16, 128>}]} {
    %c0_i32 = arith.constant 0 : i32
    %0 = arith.cmpi eq, %arg0, %c0_i32 : i32
    %c0_i32_0 = arith.constant 0 : i32
    %1 = arith.cmpi eq, %arg1, %c0_i32_0 : i32
    %2 = arith.andi %0, %1 : i1
    %3 = arith.extui %2 : i1 to i32
    %c0_i32_1 = arith.constant 0 : i32
    %4 = arith.cmpi ne, %3, %c0_i32_1 : i32
    scf.if %4 {
      %c0_22 = arith.constant 0 : index
      %c0_23 = arith.constant 0 : index
      %31 = vector.load %arg2[%c0_22, %c0_23] : memref<16x128xf32, #tpu.memory_space<vmem>>, vector<16x128xf32>
      %c0_24 = arith.constant 0 : index
      %c0_25 = arith.constant 0 : index
      %32 = vector.load %arg15[%c0_24, %c0_25] : memref<16x128xf32, #tpu.memory_space<vmem>>, vector<16x128xf32>
      tpu.vector_store %arg15[%c0_24, %c0_25], %31 {strides = array<i32>} : memref<16x128xf32, #tpu.memory_space<vmem>>, vector<16x128xf32>,
      %cst_26 = arith.constant 0.000000e+00 : f32
      %33 = vector.broadcast %cst_26 : f32 to vector<2x128xf32>
      %c0_27 = arith.constant 0 : index
      %c0_28 = arith.constant 0 : index
      %34 = vector.load %arg18[%c0_27, %c0_28] : memref<2x128xf32, #tpu.memory_space<vmem>>, vector<2x128xf32>
      tpu.vector_store %arg18[%c0_27, %c0_28], %33 {strides = array<i32>} : memref<2x128xf32, #tpu.memory_space<vmem>>, vector<2x128xf32>,
    } else {
    }
    %c0_i32_2 = arith.constant 0 : i32
    %5 = arith.cmpi eq, %arg1, %c0_i32_2 : i32
    %6 = arith.extui %5 : i1 to i32
    %c0_i32_3 = arith.constant 0 : i32
    %7 = arith.cmpi ne, %6, %c0_i32_3 : i32
    scf.if %7 {
      %c0_22 = arith.constant 0 : index
      %c0_23 = arith.constant 0 : index
      %31 = vector.load %arg15[%c0_22, %c0_23] : memref<16x128xf32, #tpu.memory_space<vmem>>, vector<16x128xf32>
      %c0_24 = arith.constant 0 : index
      %c0_25 = arith.constant 0 : index
      %32 = vector.load %arg16[%c0_24, %c0_25] : memref<16x128xf32, #tpu.memory_space<vmem>>, vector<16x128xf32>
      tpu.vector_store %arg16[%c0_24, %c0_25], %31 {strides = array<i32>} : memref<16x128xf32, #tpu.memory_space<vmem>>, vector<16x128xf32>,
      %cst_26 = arith.constant 0.000000e+00 : f32
      %33 = vector.broadcast %cst_26 : f32 to vector<16x128xf32>
      %c0_27 = arith.constant 0 : index
      %c0_28 = arith.constant 0 : index
      %34 = vector.load %arg17[%c0_27, %c0_28] : memref<16x128xf32, #tpu.memory_space<vmem>>, vector<16x128xf32>
      tpu.vector_store %arg17[%c0_27, %c0_28], %33 {strides = array<i32>} : memref<16x128xf32, #tpu.memory_space<vmem>>, vector<16x128xf32>,
    } else {
    }
    %c0_i32_4 = arith.constant 0 : i32
    %8 = arith.cmpi eq, %arg1, %c0_i32_4 : i32
    %c0_i32_5 = arith.constant 0 : i32
    %9 = arith.cmpi sgt, %arg0, %c0_i32_5 : i32
    %10 = arith.andi %8, %9 : i1
    %11 = arith.extui %10 : i1 to i32
    %c0_i32_6 = arith.constant 0 : i32
    %12 = arith.cmpi ne, %11, %c0_i32_6 : i32
    scf.if %12 {
      %c0_22 = arith.constant 0 : index
      %c0_23 = arith.constant 0 : index
      %31 = vector.load %arg5[%c0_22, %c0_23] : memref<16x2xbf16, #tpu.memory_space<vmem>>, vector<16x2xbf16>
      %c0_24 = arith.constant 0 : index
      %c0_25 = arith.constant 0 : index
      %32 = vector.load %arg18[%c0_24, %c0_25] : memref<2x128xf32, #tpu.memory_space<vmem>>, vector<2x128xf32>
      %33 = arith.truncf %32 : vector<2x128xf32> to vector<2x128xbf16>
      %cst_26 = arith.constant dense<0.000000e+00> : vector<16x128xf32>
      %34 = tpu.matmul %31, %33, %cst_26 {dimension_numbers = #tpu.dot_dimension_numbers<[1], [0], [0], [1], [0, 0, 1, 1], [], []>} : vector<16x2xbf16>, vector<2x128xbf16>, vector<16x128xf32> -> vector<16x128xf32>
      %c0_27 = arith.constant 0 : index
      %c0_28 = arith.constant 0 : index
      %35 = vector.load %arg16[%c0_27, %c0_28] : memref<16x128xf32, #tpu.memory_space<vmem>>, vector<16x128xf32>
      %36 = arith.addf %35, %34 : vector<16x128xf32>
      %c0_29 = arith.constant 0 : index
      %c0_30 = arith.constant 0 : index
      %37 = vector.load %arg16[%c0_29, %c0_30] : memref<16x128xf32, #tpu.memory_space<vmem>>, vector<16x128xf32>
      tpu.vector_store %arg16[%c0_29, %c0_30], %36 {strides = array<i32>} : memref<16x128xf32, #tpu.memory_space<vmem>>, vector<16x128xf32>,
    } else {
    }
    %c0 = arith.constant 0 : index
    %c0_7 = arith.constant 0 : index
    %13 = vector.load %arg16[%c0, %c0_7] : memref<16x128xf32, #tpu.memory_space<vmem>>, vector<16x128xf32>
    %14 = arith.truncf %13 : vector<16x128xf32> to vector<16x128xbf16>
    %c0_8 = arith.constant 0 : index
    %c0_9 = arith.constant 0 : index
    %15 = vector.load %arg3[%c0_8, %c0_9] : memref<32x16xbf16, #tpu.memory_space<vmem>>, vector<32x16xbf16>
    %cst = arith.constant dense<0.000000e+00> : vector<32x128xf32>
    %16 = tpu.matmul %15, %14, %cst {dimension_numbers = #tpu.dot_dimension_numbers<[1], [0], [0], [1], [0, 0, 1, 1], [], []>} : vector<32x16xbf16>, vector<16x128xbf16>, vector<32x128xf32> -> vector<32x128xf32>
    %c0_10 = arith.constant 0 : index
    %c0_11 = arith.constant 0 : index
    %17 = vector.load %arg6[%c0_10, %c0_11] : memref<32x1xf32, #tpu.memory_space<vmem>>, vector<32x1xf32>
    %18 = vector.broadcast %17 : vector<32x1xf32> to vector<32x128xf32>
    %19 = arith.addf %16, %18 : vector<32x128xf32>
    %cst_12 = arith.constant 0.000000e+00 : f32
    %20 = vector.broadcast %cst_12 : f32 to vector<32x128xf32>
    %21 = arith.maximumf %19, %20 : vector<32x128xf32>
    %c0_13 = arith.constant 0 : index
    %c0_14 = arith.constant 0 : index
    %22 = vector.load %arg17[%c0_13, %c0_14] : memref<16x128xf32, #tpu.memory_space<vmem>>, vector<16x128xf32>
    %c0_15 = arith.constant 0 : index
    %c0_16 = arith.constant 0 : index
    %23 = vector.load %arg4[%c0_15, %c0_16] : memref<32x16xbf16, #tpu.memory_space<vmem>>, vector<32x16xbf16>
    %24 = arith.truncf %21 : vector<32x128xf32> to vector<32x128xbf16>
    %cst_17 = arith.constant dense<0.000000e+00> : vector<16x128xf32>
    %25 = tpu.matmul %23, %24, %cst_17 {dimension_numbers = #tpu.dot_dimension_numbers<[0], [0], [1], [1], [0, 1, 1, 1], [], []>} : vector<32x16xbf16>, vector<32x128xbf16>, vector<16x128xf32> -> vector<16x128xf32>
    %26 = arith.addf %22, %25 : vector<16x128xf32>
    %c0_18 = arith.constant 0 : index
    %c0_19 = arith.constant 0 : index
    %27 = vector.load %arg17[%c0_18, %c0_19] : memref<16x128xf32, #tpu.memory_space<vmem>>, vector<16x128xf32>
    tpu.vector_store %arg17[%c0_18, %c0_19], %26 {strides = array<i32>} : memref<16x128xf32, #tpu.memory_space<vmem>>, vector<16x128xf32>,
    %c0_i32_20 = arith.constant 0 : i32
    %28 = arith.cmpi eq, %arg1, %c0_i32_20 : i32
    %29 = arith.extui %28 : i1 to i32
    %c0_i32_21 = arith.constant 0 : i32
    %30 = arith.cmpi ne, %29, %c0_i32_21 : i32
    scf.if %30 {
      %c0_22 = arith.constant 0 : index
      %c0_23 = arith.constant 0 : index
      %31 = vector.load %arg16[%c0_22, %c0_23] : memref<16x128xf32, #tpu.memory_space<vmem>>, vector<16x128xf32>
      %cst_24 = arith.constant 1.000000e+00 : f32
      %32 = vector.broadcast %cst_24 : f32 to vector<16x128xf32>
      %33 = arith.mulf %32, %31 : vector<16x128xf32>
      %c0_25 = arith.constant 0 : index
      %c0_26 = arith.constant 0 : index
      %34 = vector.load %arg17[%c0_25, %c0_26] : memref<16x128xf32, #tpu.memory_space<vmem>>, vector<16x128xf32>
      %35 = arith.addf %33, %34 : vector<16x128xf32>
      %36 = arith.truncf %35 : vector<16x128xf32> to vector<16x128xbf16>
      %c0_27 = arith.constant 0 : index
      %c0_28 = arith.constant 0 : index
      %c0_29 = arith.constant 0 : index
      %37 = vector.load %arg7[%c0_27, %c0_28, %c0_29] : memref<1x128x128xbf16, #tpu.memory_space<vmem>>, vector<1x128x128xbf16>
      %38 = vector.shape_cast %37 : vector<1x128x128xbf16> to vector<128x128xbf16>
      %cst_30 = arith.constant dense<0.000000e+00> : vector<16x128xf32>
      %39 = tpu.matmul %36, %38, %cst_30 {dimension_numbers = #tpu.dot_dimension_numbers<[1], [0], [0], [1], [0, 0, 1, 1], [], []>} : vector<16x128xbf16>, vector<128x128xbf16>, vector<16x128xf32> -> vector<16x128xf32>
      %c0_31 = arith.constant 0 : index
      %c0_32 = arith.constant 0 : index
      %c0_33 = arith.constant 0 : index
      %40 = vector.load %arg8[%c0_31, %c0_32, %c0_33] : memref<1x1x128xf32, #tpu.memory_space<vmem>>, vector<1x1x128xf32>
      %41 = vector.shape_cast %40 : vector<1x1x128xf32> to vector<1x128xf32>
      %42 = vector.broadcast %41 : vector<1x128xf32> to vector<16x128xf32>
      %43 = arith.addf %39, %42 : vector<16x128xf32>
      %cst_34 = arith.constant 0.000000e+00 : f32
      %44 = vector.broadcast %cst_34 : f32 to vector<16x128xf32>
      %45 = arith.maximumf %43, %44 : vector<16x128xf32>
      %46 = arith.truncf %45 : vector<16x128xf32> to vector<16x128xbf16>
      %c0_35 = arith.constant 0 : index
      %c0_36 = arith.constant 0 : index
      %c0_37 = arith.constant 0 : index
      %47 = vector.load %arg9[%c0_35, %c0_36, %c0_37] : memref<1x128x128xbf16, #tpu.memory_space<vmem>>, vector<1x128x128xbf16>
      %48 = vector.shape_cast %47 : vector<1x128x128xbf16> to vector<128x128xbf16>
      %cst_38 = arith.constant dense<0.000000e+00> : vector<16x128xf32>
      %49 = tpu.matmul %46, %48, %cst_38 {dimension_numbers = #tpu.dot_dimension_numbers<[1], [0], [0], [1], [0, 0, 1, 1], [], []>} : vector<16x128xbf16>, vector<128x128xbf16>, vector<16x128xf32> -> vector<16x128xf32>
      %c0_39 = arith.constant 0 : index
      %c0_40 = arith.constant 0 : index
      %c0_41 = arith.constant 0 : index
      %50 = vector.load %arg10[%c0_39, %c0_40, %c0_41] : memref<1x1x128xf32, #tpu.memory_space<vmem>>, vector<1x1x128xf32>
      %51 = vector.shape_cast %50 : vector<1x1x128xf32> to vector<1x128xf32>
      %52 = vector.broadcast %51 : vector<1x128xf32> to vector<16x128xf32>
      %53 = arith.addf %49, %52 : vector<16x128xf32>
      %c2_i32 = arith.constant 2 : i32
      %54 = arith.cmpi eq, %arg0, %c2_i32 : i32
      %55 = arith.extui %54 : i1 to i32
      %c0_i32_42 = arith.constant 0 : i32
      %56 = arith.cmpi ne, %55, %c0_i32_42 : i32
      scf.if %56 {
        %c0_45 = arith.constant 0 : index
        %c0_46 = arith.constant 0 : index
        %60 = vector.load %arg15[%c0_45, %c0_46] : memref<16x128xf32, #tpu.memory_space<vmem>>, vector<16x128xf32>
        tpu.vector_store %arg15[%c0_45, %c0_46], %53 {strides = array<i32>} : memref<16x128xf32, #tpu.memory_space<vmem>>, vector<16x128xf32>,
      } else {
      }
      %c2_i32_43 = arith.constant 2 : i32
      %57 = arith.cmpi slt, %arg0, %c2_i32_43 : i32
      %58 = arith.extui %57 : i1 to i32
      %c0_i32_44 = arith.constant 0 : i32
      %59 = arith.cmpi ne, %58, %c0_i32_44 : i32
      scf.if %59 {
        %cst_45 = arith.constant 0.000000e+00 : f32
        %60 = vector.broadcast %cst_45 : f32 to vector<16x128xf32>
        %61 = arith.maximumf %53, %60 : vector<16x128xf32>
        %c0_46 = arith.constant 0 : index
        %c0_47 = arith.constant 0 : index
        %62 = vector.load %arg15[%c0_46, %c0_47] : memref<16x128xf32, #tpu.memory_space<vmem>>, vector<16x128xf32>
        tpu.vector_store %arg15[%c0_46, %c0_47], %61 {strides = array<i32>} : memref<16x128xf32, #tpu.memory_space<vmem>>, vector<16x128xf32>,
        %c0_48 = arith.constant 0 : index
        %c0_49 = arith.constant 0 : index
        %63 = vector.load %arg5[%c0_48, %c0_49] : memref<16x2xbf16, #tpu.memory_space<vmem>>, vector<16x2xbf16>
        %64 = arith.truncf %31 : vector<16x128xf32> to vector<16x128xbf16>
        %cst_50 = arith.constant dense<0.000000e+00> : vector<2x128xf32>
        %65 = tpu.matmul %63, %64, %cst_50 {dimension_numbers = #tpu.dot_dimension_numbers<[0], [0], [1], [1], [0, 1, 1, 1], [], []>} : vector<16x2xbf16>, vector<16x128xbf16>, vector<2x128xf32> -> vector<2x128xf32>
        %c0_51 = arith.constant 0 : index
        %c0_52 = arith.constant 0 : index
        %66 = vector.load %arg18[%c0_51, %c0_52] : memref<2x128xf32, #tpu.memory_space<vmem>>, vector<2x128xf32>
        %67 = arith.addf %65, %66 : vector<2x128xf32>
        %68 = arith.truncf %67 : vector<2x128xf32> to vector<2x128xbf16>
        %c0_53 = arith.constant 0 : index
        %c0_54 = arith.constant 0 : index
        %c0_55 = arith.constant 0 : index
        %69 = vector.load %arg11[%c0_53, %c0_54, %c0_55] : memref<1x128x128xbf16, #tpu.memory_space<vmem>>, vector<1x128x128xbf16>
        %70 = vector.shape_cast %69 : vector<1x128x128xbf16> to vector<128x128xbf16>
        %cst_56 = arith.constant dense<0.000000e+00> : vector<2x128xf32>
        %71 = tpu.matmul %68, %70, %cst_56 {dimension_numbers = #tpu.dot_dimension_numbers<[1], [0], [0], [1], [0, 0, 1, 1], [], []>} : vector<2x128xbf16>, vector<128x128xbf16>, vector<2x128xf32> -> vector<2x128xf32>
        %c0_57 = arith.constant 0 : index
        %c0_58 = arith.constant 0 : index
        %c0_59 = arith.constant 0 : index
        %72 = vector.load %arg12[%c0_57, %c0_58, %c0_59] : memref<1x1x128xf32, #tpu.memory_space<vmem>>, vector<1x1x128xf32>
        %73 = vector.shape_cast %72 : vector<1x1x128xf32> to vector<1x128xf32>
        %74 = vector.broadcast %73 : vector<1x128xf32> to vector<2x128xf32>
        %75 = arith.addf %71, %74 : vector<2x128xf32>
        %cst_60 = arith.constant 0.000000e+00 : f32
        %76 = vector.broadcast %cst_60 : f32 to vector<2x128xf32>
        %77 = arith.maximumf %75, %76 : vector<2x128xf32>
        %78 = arith.truncf %77 : vector<2x128xf32> to vector<2x128xbf16>
        %c0_61 = arith.constant 0 : index
        %c0_62 = arith.constant 0 : index
        %c0_63 = arith.constant 0 : index
        %79 = vector.load %arg13[%c0_61, %c0_62, %c0_63] : memref<1x128x128xbf16, #tpu.memory_space<vmem>>, vector<1x128x128xbf16>
        %80 = vector.shape_cast %79 : vector<1x128x128xbf16> to vector<128x128xbf16>
        %cst_64 = arith.constant dense<0.000000e+00> : vector<2x128xf32>
        %81 = tpu.matmul %78, %80, %cst_64 {dimension_numbers = #tpu.dot_dimension_numbers<[1], [0], [0], [1], [0, 0, 1, 1], [], []>} : vector<2x128xbf16>, vector<128x128xbf16>, vector<2x128xf32> -> vector<2x128xf32>
        %c0_65 = arith.constant 0 : index
        %c0_66 = arith.constant 0 : index
        %c0_67 = arith.constant 0 : index
        %82 = vector.load %arg14[%c0_65, %c0_66, %c0_67] : memref<1x1x128xf32, #tpu.memory_space<vmem>>, vector<1x1x128xf32>
        %83 = vector.shape_cast %82 : vector<1x1x128xf32> to vector<1x128xf32>
        %84 = vector.broadcast %83 : vector<1x128xf32> to vector<2x128xf32>
        %85 = arith.addf %81, %84 : vector<2x128xf32>
        %cst_68 = arith.constant 0.000000e+00 : f32
        %86 = vector.broadcast %cst_68 : f32 to vector<2x128xf32>
        %87 = arith.maximumf %85, %86 : vector<2x128xf32>
        %c0_69 = arith.constant 0 : index
        %c0_70 = arith.constant 0 : index
        %88 = vector.load %arg18[%c0_69, %c0_70] : memref<2x128xf32, #tpu.memory_space<vmem>>, vector<2x128xf32>
        tpu.vector_store %arg18[%c0_69, %c0_70], %87 {strides = array<i32>} : memref<2x128xf32, #tpu.memory_space<vmem>>, vector<2x128xf32>,
      } else {
      }
    } else {
    }
    return
  }
  func.func @transform_0(%arg0: i32, %arg1: i32) -> (i32, i32) {
    %c0_i32 = arith.constant 0 : i32
    %c0_i32_0 = arith.constant 0 : i32
    %c0_i32_1 = arith.constant 0 : i32
    return %c0_i32, %c0_i32_0 : i32, i32
  }
  func.func @transform_1(%arg0: i32, %arg1: i32) -> (i32, i32) {
    %c0_i32 = arith.constant 0 : i32
    %c0_i32_0 = arith.constant 0 : i32
    return %arg1, %c0_i32 : i32, i32
  }
  func.func @transform_2(%arg0: i32, %arg1: i32) -> (i32, i32) {
    %c0_i32 = arith.constant 0 : i32
    %c0_i32_0 = arith.constant 0 : i32
    return %arg1, %c0_i32 : i32, i32
  }
  func.func @transform_3(%arg0: i32, %arg1: i32) -> (i32, i32) {
    %c0_i32 = arith.constant 0 : i32
    %c0_i32_0 = arith.constant 0 : i32
    %c0_i32_1 = arith.constant 0 : i32
    return %c0_i32, %c0_i32_0 : i32, i32
  }
  func.func @transform_4(%arg0: i32, %arg1: i32) -> (i32, i32) {
    %c0_i32 = arith.constant 0 : i32
    %c0_i32_0 = arith.constant 0 : i32
    return %arg1, %c0_i32 : i32, i32
  }
  func.func @transform_5(%arg0: i32, %arg1: i32) -> (i32, i32, i32) {
    %c0_i32 = arith.constant 0 : i32
    %c0_i32_0 = arith.constant 0 : i32
    %c0_i32_1 = arith.constant 0 : i32
    return %arg0, %c0_i32, %c0_i32_0 : i32, i32, i32
  }
  func.func @transform_6(%arg0: i32, %arg1: i32) -> (i32, i32, i32) {
    %c0_i32 = arith.constant 0 : i32
    %c0_i32_0 = arith.constant 0 : i32
    %c0_i32_1 = arith.constant 0 : i32
    return %arg0, %c0_i32, %c0_i32_0 : i32, i32, i32
  }
  func.func @transform_7(%arg0: i32, %arg1: i32) -> (i32, i32, i32) {
    %c0_i32 = arith.constant 0 : i32
    %c0_i32_0 = arith.constant 0 : i32
    %c0_i32_1 = arith.constant 0 : i32
    return %arg0, %c0_i32, %c0_i32_0 : i32, i32, i32
  }
  func.func @transform_8(%arg0: i32, %arg1: i32) -> (i32, i32, i32) {
    %c0_i32 = arith.constant 0 : i32
    %c0_i32_0 = arith.constant 0 : i32
    %c0_i32_1 = arith.constant 0 : i32
    return %arg0, %c0_i32, %c0_i32_0 : i32, i32, i32
  }
  func.func @transform_9(%arg0: i32, %arg1: i32) -> (i32, i32, i32) {
    %c0_i32 = arith.constant 0 : i32
    %c0_i32_0 = arith.constant 0 : i32
    %c0_i32_1 = arith.constant 0 : i32
    return %arg0, %c0_i32, %c0_i32_0 : i32, i32, i32
  }
  func.func @transform_10(%arg0: i32, %arg1: i32) -> (i32, i32, i32) {
    %c0_i32 = arith.constant 0 : i32
    %c0_i32_0 = arith.constant 0 : i32
    %c0_i32_1 = arith.constant 0 : i32
    return %arg0, %c0_i32, %c0_i32_0 : i32, i32, i32
  }
  func.func @transform_11(%arg0: i32, %arg1: i32) -> (i32, i32, i32) {
    %c0_i32 = arith.constant 0 : i32
    %c0_i32_0 = arith.constant 0 : i32
    %c0_i32_1 = arith.constant 0 : i32
    return %arg0, %c0_i32, %c0_i32_0 : i32, i32, i32
  }
  func.func @transform_12(%arg0: i32, %arg1: i32) -> (i32, i32, i32) {
    %c0_i32 = arith.constant 0 : i32
    %c0_i32_0 = arith.constant 0 : i32
    %c0_i32_1 = arith.constant 0 : i32
    return %arg0, %c0_i32, %c0_i32_0 : i32, i32, i32
  }
  func.func @transform_13(%arg0: i32, %arg1: i32) -> (i32, i32) {
    %c0_i32 = arith.constant 0 : i32
    %c0_i32_0 = arith.constant 0 : i32
    %c0_i32_1 = arith.constant 0 : i32
    return %c0_i32, %c0_i32_0 : i32, i32
  }
}

</mosaic_0001>

<llo_original>
// kernel: tpu_custom_call.1
$region0: #{tpu_custom_call.1}
  #allocation0 [shape = 'u32[]', space=smem, size = 0x4, offset = 0x4, fixed_abs, tag = 'smem constant byte address 0x4 - core index']
  #allocation1 [shape = 'u32[144,128]{1,0:T(1,128)}', space=vmem, size = 0x12000, scoped, tag = 'internal scratch']
  #allocation2 [shape = 'f32[16,128]{1,0:T(8,128)}', space=vmem, size = 0x2000, scoped, tag = 'scratch operand']
  #allocation3 [shape = 'f32[16,128]{1,0:T(8,128)}', space=vmem, size = 0x2000, scoped, tag = 'scratch operand']
  #allocation4 [shape = 'f32[2,128]{1,0:T(2,128)}', space=vmem, size = 0x400, scoped, tag = 'scratch operand']
  %s0 = inlined_call_operand.vmem [shape: f32[16,128], index: 0, kind: input, shape index: {}]
  %s1 = inlined_call_operand.vmem [shape: bf16[32,16], index: 1, kind: input, shape index: {}]
  %s2 = inlined_call_operand.vmem [shape: bf16[32,16], index: 2, kind: input, shape index: {}]
  %s3 = inlined_call_operand.vmem [shape: bf16[16,2], index: 3, kind: input, shape index: {}]
  %s4 = inlined_call_operand.vmem [shape: f32[32,1], index: 4, kind: input, shape index: {}]
  %s5 = inlined_call_operand.hbm [shape: bf16[3,128,128], index: 5, kind: input, shape index: {}]
  %s6 = inlined_call_operand.vmem [shape: f32[3,1,128], index: 6, kind: input, shape index: {}]
  %s7 = inlined_call_operand.hbm [shape: bf16[3,128,128], index: 7, kind: input, shape index: {}]
  %s8 = inlined_call_operand.vmem [shape: f32[3,1,128], index: 8, kind: input, shape index: {}]
  %s9 = inlined_call_operand.hbm [shape: bf16[3,128,128], index: 9, kind: input, shape index: {}]
  %s10 = inlined_call_operand.vmem [shape: f32[3,1,128], index: 10, kind: input, shape index: {}]
  %s11 = inlined_call_operand.hbm [shape: bf16[3,128,128], index: 11, kind: input, shape index: {}]
  %s12 = inlined_call_operand.vmem [shape: f32[3,1,128], index: 12, kind: input, shape index: {}]
  %s13 = inlined_call_operand.hbm [shape: f32[16,128], index: 13, kind: output, shape index: {}]
  %s14 = sld [smem:[#allocation0]]
  $region125: #{tpu_custom_call.1} parent=0
    _
  %s16 = ssub.s32 1, %s14
  %s17 = scalar_select 0, %s16, %s14
  $region1: #{tpu_custom_call.1} parent=0
    #allocation5 [shape = 'u8[65536]{0}', space=vmem, size = 0x10000, scoped, tag = 'input window, operand 5']
    #allocation6 [shape = 's32[2]{0}', space=sflag, size = 0x8, scoped, tag = 'scoped memory for tpu_custom_call.1']
    #allocation7 [shape = 's32[2]{0}', space=sflag, size = 0x8, scoped, tag = 'scoped memory for tpu_custom_call.1']
    #allocation8 [shape = 'u8[65536]{0}', space=vmem, size = 0x10000, scoped, tag = 'input window, operand 7']
    #allocation9 [shape = 's32[2]{0}', space=sflag, size = 0x8, scoped, tag = 'scoped memory for tpu_custom_call.1']
    #allocation10 [shape = 'u8[65536]{0}', space=vmem, size = 0x10000, scoped, tag = 'input window, operand 9']
    #allocation11 [shape = 'u8[65536]{0}', space=vmem, size = 0x10000, scoped, tag = 'input window, operand 11']
    #allocation12 [shape = 's32[2]{0}', space=sflag, size = 0x8, scoped, tag = 'scoped memory for tpu_custom_call.1']
    #allocation13 [shape = 'u8[8192]{0}', space=vmem, size = 0x2000, scoped, tag = 'output window, operand 0, single buffered']
    %18 = vsyncpa [#allocation6], 0
    %s19 = scalar_lea.sflag [#allocation6], 1
    %20 = vsyncpa %s19, 0
    %21 = vsyncpa [#allocation9], 0
    %s22 = scalar_lea.sflag [#allocation9], 1
    %23 = vsyncpa %s22, 0
    %24 = vsyncpa [#allocation12], 0
    %s25 = scalar_lea.sflag [#allocation12], 1
    %26 = vsyncpa %s25, 0
    %27 = vsyncpa [#allocation7], 0
    loop: start=0, step=1, limit=5
    $region2: #{tpu_custom_call.1} parent=1 // loop_pre_header
      _
    $region3: #{tpu_custom_call.1} parent=1 // loop_header
      %s29 = sphi 0, %s33
      %p30 = scmp.ge.s32.totalorder %s29, 5
      %s36 = sphi 0, %s48
      %s37 = sphi 0, %s44
      %s38 = sphi 0, %s36
      %s39 = sphi 0, %s37
      %s40 = sphi 0, %s38
      %s41 = sphi 0, %s39
      %s49 = sphi 0, %s49
      %s51 = sphi 0, %s49
      %s52 = sphi 0, %s51
      %s66 = sphi 0, %s52
      %s72 = sphi 0, %s74
      %s75 = sphi 0, %s72
      %s76 = sphi 0, %s75
      %s92 = sphi 0, %s76
      %s98 = sphi 0, %s100
      %s101 = sphi 0, %s98
      %s102 = sphi 0, %s101
      %s118 = sphi 0, %s102
      %s122 = sphi 0, %s122
      %s124 = sphi 0, %s122
      %s125 = sphi 0, %s124
      %s139 = sphi 0, %s125
      %s145 = sphi 0, %s147
      %s148 = sphi 0, %s145
      %s149 = sphi 0, %s148
      %s165 = sphi 0, %s149
      %s171 = sphi 0, %s173
      %s174 = sphi 0, %s171
      %s175 = sphi 0, %s174
      %s191 = sphi 0, %s175
      %s197 = sphi 0, %s199
      %s200 = sphi 0, %s197
      %s201 = sphi 0, %s200
      %s217 = sphi 0, %s201
      %s223 = sphi 0, %s225
      %s226 = sphi 0, %s223
      %s227 = sphi 0, %s226
      %s243 = sphi 0, %s227
      %s249 = sphi 0, %s251
      %s252 = sphi 0, %s249
      %s253 = sphi 0, %s252
      %s269 = sphi 0, %s253
      %s275 = sphi 0, %s277
      %s278 = sphi 0, %s275
      %s279 = sphi 0, %s278
      %s295 = sphi 0, %s279
      %s301 = sphi 0, %s303
      %s304 = sphi 0, %s301
      %s305 = sphi 0, %s304
      %s321 = sphi 0, %s305
      %s327 = sphi 0, %s329
      %s330 = sphi 0, %s327
      %s331 = sphi 0, %s330
      %s347 = sphi 0, %s331
      %s353 = sphi 0, %s355
      %s356 = sphi 0, %s353
      %s357 = sphi 0, %s356
      %s373 = sphi 0, %s357
      %s377 = sphi 0, %s377
      %s379 = sphi 0, %s377
      %s380 = sphi 0, %s379
      %s394 = sphi 0, %s380
    $region4: #{tpu_custom_call.1} parent=1 // loop_header_branch
      %32 = sbr.rel (%p30) target = $region8
    $region5: #{tpu_custom_call.1} parent=1 // loop_body
      %s34 = ssub.s32 %s29, 1
      %s35 = ssub.s32 %s29, 2
      %s42 = sadd.s32 1, %s37
      %p43 = scmp.ge.s32.totalorder %s42, 1
      %s44 = scalar_select %p43, 0, %s42
      %s45 = sadd.s32 1, %s36
      %s46 = scalar_select %p43, %s45, %s36
      %p47 = scmp.ge.s32.totalorder %s46, 3
      %s48 = scalar_select %p47, 0, %s46
      %s50 = sadd.s32 %s49, 1
      %p53 = scmp.eq.s32.totalorder %s29, 2
      %p54 = scmp.ne.s32.totalorder %s49, %s51
      %p55 = scmp.eq.s32.totalorder %s29, 0
      %p56 = por %p54, %p55
      %p57 = scmp.ne.s32.totalorder %s49, %s51
      %p58 = scmp.eq.s32.totalorder %s34, 2
      %p59 = por %p57, %p58
      %p60 = scmp.ne.s32.totalorder %s51, %s52
      %p61 = scmp.eq.s32.totalorder %s34, 0
      %p62 = por %p60, %p61
      %p63 = scmp.ne.s32.totalorder %s51, %s52
      %p64 = scmp.eq.s32.totalorder %s35, 2
      %p65 = por %p63, %p64
      %p67 = scmp.ne.s32.totalorder %s52, %s66
      %p68 = scmp.eq.s32.totalorder %s35, 0
      %p69 = por %p67, %p68
      %s70 = ssub.s32 %s37, %s44
      %p71 = scmp.eq.s32.totalorder %s70, 0
      %s73 = sadd.s32 %s72, 1
      %s74 = scalar_select %p71, %s72, %s73
      %p77 = pneg %p71
      %p78 = scmp.eq.s32.totalorder %s29, 2
      %p79 = por %p77, %p78
      %p80 = scmp.ne.s32.totalorder %s72, %s75
      %p81 = scmp.eq.s32.totalorder %s29, 0
      %p82 = por %p80, %p81
      %p83 = scmp.ne.s32.totalorder %s72, %s75
      %p84 = scmp.eq.s32.totalorder %s34, 2
      %p85 = por %p83, %p84
      %p86 = scmp.ne.s32.totalorder %s75, %s76
      %p87 = scmp.eq.s32.totalorder %s34, 0
      %p88 = por %p86, %p87
      %p89 = scmp.ne.s32.totalorder %s75, %s76
      %p90 = scmp.eq.s32.totalorder %s35, 2
      %p91 = por %p89, %p90
      %p93 = scmp.ne.s32.totalorder %s76, %s92
      %p94 = scmp.eq.s32.totalorder %s35, 0
      %p95 = por %p93, %p94
      %s96 = ssub.s32 %s37, %s44
      %p97 = scmp.eq.s32.totalorder %s96, 0
      %s99 = sadd.s32 %s98, 1
      %s100 = scalar_select %p97, %s98, %s99
      %p103 = pneg %p97
      %p104 = scmp.eq.s32.totalorder %s29, 2
      %p105 = por %p103, %p104
      %p106 = scmp.ne.s32.totalorder %s98, %s101
      %p107 = scmp.eq.s32.totalorder %s29, 0
      %p108 = por %p106, %p107
      %p109 = scmp.ne.s32.totalorder %s98, %s101
      %p110 = scmp.eq.s32.totalorder %s34, 2
      %p111 = por %p109, %p110
      %p112 = scmp.ne.s32.totalorder %s101, %s102
      %p113 = scmp.eq.s32.totalorder %s34, 0
      %p114 = por %p112, %p113
      %p115 = scmp.ne.s32.totalorder %s101, %s102
      %p116 = scmp.eq.s32.totalorder %s35, 2
      %p117 = por %p115, %p116
      %p119 = scmp.ne.s32.totalorder %s102, %s118
      %p120 = scmp.eq.s32.totalorder %s35, 0
      %p121 = por %p119, %p120
      %s123 = sadd.s32 %s122, 1
      %p126 = scmp.eq.s32.totalorder %s29, 2
      %p127 = scmp.ne.s32.totalorder %s122, %s124
      %p128 = scmp.eq.s32.totalorder %s29, 0
      %p129 = por %p127, %p128
      %p130 = scmp.ne.s32.totalorder %s122, %s124
      %p131 = scmp.eq.s32.totalorder %s34, 2
      %p132 = por %p130, %p131
      %p133 = scmp.ne.s32.totalorder %s124, %s125
      %p134 = scmp.eq.s32.totalorder %s34, 0
      %p135 = por %p133, %p134
      %p136 = scmp.ne.s32.totalorder %s124, %s125
      %p137 = scmp.eq.s32.totalorder %s35, 2
      %p138 = por %p136, %p137
      %p140 = scmp.ne.s32.totalorder %s125, %s139
      %p141 = scmp.eq.s32.totalorder %s35, 0
      %p142 = por %p140, %p141
      %s143 = ssub.s32 %s37, %s44
      %p144 = scmp.eq.s32.totalorder %s143, 0
      %s146 = sadd.s32 %s145, 1
      %s147 = scalar_select %p144, %s145, %s146
      %p150 = pneg %p144
      %p151 = scmp.eq.s32.totalorder %s29, 2
      %p152 = por %p150, %p151
      %p153 = scmp.ne.s32.totalorder %s145, %s148
      %p154 = scmp.eq.s32.totalorder %s29, 0
      %p155 = por %p153, %p154
      %p156 = scmp.ne.s32.totalorder %s145, %s148
      %p157 = scmp.eq.s32.totalorder %s34, 2
      %p158 = por %p156, %p157
      %p159 = scmp.ne.s32.totalorder %s148, %s149
      %p160 = scmp.eq.s32.totalorder %s34, 0
      %p161 = por %p159, %p160
      %p162 = scmp.ne.s32.totalorder %s148, %s149
      %p163 = scmp.eq.s32.totalorder %s35, 2
      %p164 = por %p162, %p163
      %p166 = scmp.ne.s32.totalorder %s149, %s165
      %p167 = scmp.eq.s32.totalorder %s35, 0
      %p168 = por %p166, %p167
      %s169 = ssub.s32 %s36, %s48
      %p170 = scmp.eq.s32.totalorder %s169, 0
      %s172 = sadd.s32 %s171, 1
      %s173 = scalar_select %p170, %s171, %s172
      %p176 = pneg %p170
      %p177 = scmp.eq.s32.totalorder %s29, 2
      %p178 = por %p176, %p177
      %p179 = scmp.ne.s32.totalorder %s171, %s174
      %p180 = scmp.eq.s32.totalorder %s29, 0
      %p181 = por %p179, %p180
      %p182 = scmp.ne.s32.totalorder %s171, %s174
      %p183 = scmp.eq.s32.totalorder %s34, 2
      %p184 = por %p182, %p183
      %p185 = scmp.ne.s32.totalorder %s174, %s175
      %p186 = scmp.eq.s32.totalorder %s34, 0
      %p187 = por %p185, %p186
      %p188 = scmp.ne.s32.totalorder %s174, %s175
      %p189 = scmp.eq.s32.totalorder %s35, 2
      %p190 = por %p188, %p189
      %p192 = scmp.ne.s32.totalorder %s175, %s191
      %p193 = scmp.eq.s32.totalorder %s35, 0
      %p194 = por %p192, %p193
      %s195 = ssub.s32 %s36, %s48
      %p196 = scmp.eq.s32.totalorder %s195, 0
      %s198 = sadd.s32 %s197, 1
      %s199 = scalar_select %p196, %s197, %s198
      %p202 = pneg %p196
      %p203 = scmp.eq.s32.totalorder %s29, 2
      %p204 = por %p202, %p203
      %p205 = scmp.ne.s32.totalorder %s197, %s200
      %p206 = scmp.eq.s32.totalorder %s29, 0
      %p207 = por %p205, %p206
      %p208 = scmp.ne.s32.totalorder %s197, %s200
      %p209 = scmp.eq.s32.totalorder %s34, 2
      %p210 = por %p208, %p209
      %p211 = scmp.ne.s32.totalorder %s200, %s201
      %p212 = scmp.eq.s32.totalorder %s34, 0
      %p213 = por %p211, %p212
      %p214 = scmp.ne.s32.totalorder %s200, %s201
      %p215 = scmp.eq.s32.totalorder %s35, 2
      %p216 = por %p214, %p215
      %p218 = scmp.ne.s32.totalorder %s201, %s217
      %p219 = scmp.eq.s32.totalorder %s35, 0
      %p220 = por %p218, %p219
      %s221 = ssub.s32 %s36, %s48
      %p222 = scmp.eq.s32.totalorder %s221, 0
      %s224 = sadd.s32 %s223, 1
      %s225 = scalar_select %p222, %s223, %s224
      %p228 = pneg %p222
      %p229 = scmp.eq.s32.totalorder %s29, 2
      %p230 = por %p228, %p229
      %p231 = scmp.ne.s32.totalorder %s223, %s226
      %p232 = scmp.eq.s32.totalorder %s29, 0
      %p233 = por %p231, %p232
      %p234 = scmp.ne.s32.totalorder %s223, %s226
      %p235 = scmp.eq.s32.totalorder %s34, 2
      %p236 = por %p234, %p235
      %p237 = scmp.ne.s32.totalorder %s226, %s227
      %p238 = scmp.eq.s32.totalorder %s34, 0
      %p239 = por %p237, %p238
      %p240 = scmp.ne.s32.totalorder %s226, %s227
      %p241 = scmp.eq.s32.totalorder %s35, 2
      %p242 = por %p240, %p241
      %p244 = scmp.ne.s32.totalorder %s227, %s243
      %p245 = scmp.eq.s32.totalorder %s35, 0
      %p246 = por %p244, %p245
      %s247 = ssub.s32 %s36, %s48
      %p248 = scmp.eq.s32.totalorder %s247, 0
      %s250 = sadd.s32 %s249, 1
      %s251 = scalar_select %p248, %s249, %s250
      %p254 = pneg %p248
      %p255 = scmp.eq.s32.totalorder %s29, 2
      %p256 = por %p254, %p255
      %p257 = scmp.ne.s32.totalorder %s249, %s252
      %p258 = scmp.eq.s32.totalorder %s29, 0
      %p259 = por %p257, %p258
      %p260 = scmp.ne.s32.totalorder %s249, %s252
      %p261 = scmp.eq.s32.totalorder %s34, 2
      %p262 = por %p260, %p261
      %p263 = scmp.ne.s32.totalorder %s252, %s253
      %p264 = scmp.eq.s32.totalorder %s34, 0
      %p265 = por %p263, %p264
      %p266 = scmp.ne.s32.totalorder %s252, %s253
      %p267 = scmp.eq.s32.totalorder %s35, 2
      %p268 = por %p266, %p267
      %p270 = scmp.ne.s32.totalorder %s253, %s269
      %p271 = scmp.eq.s32.totalorder %s35, 0
      %p272 = por %p270, %p271
      %s273 = ssub.s32 %s36, %s48
      %p274 = scmp.eq.s32.totalorder %s273, 0
      %s276 = sadd.s32 %s275, 1
      %s277 = scalar_select %p274, %s275, %s276
      %p280 = pneg %p274
      %p281 = scmp.eq.s32.totalorder %s29, 2
      %p282 = por %p280, %p281
      %p283 = scmp.ne.s32.totalorder %s275, %s278
      %p284 = scmp.eq.s32.totalorder %s29, 0
      %p285 = por %p283, %p284
      %p286 = scmp.ne.s32.totalorder %s275, %s278
      %p287 = scmp.eq.s32.totalorder %s34, 2
      %p288 = por %p286, %p287
      %p289 = scmp.ne.s32.totalorder %s278, %s279
      %p290 = scmp.eq.s32.totalorder %s34, 0
      %p291 = por %p289, %p290
      %p292 = scmp.ne.s32.totalorder %s278, %s279
      %p293 = scmp.eq.s32.totalorder %s35, 2
      %p294 = por %p292, %p293
      %p296 = scmp.ne.s32.totalorder %s279, %s295
      %p297 = scmp.eq.s32.totalorder %s35, 0
      %p298 = por %p296, %p297
      %s299 = ssub.s32 %s36, %s48
      %p300 = scmp.eq.s32.totalorder %s299, 0
      %s302 = sadd.s32 %s301, 1
      %s303 = scalar_select %p300, %s301, %s302
      %p306 = pneg %p300
      %p307 = scmp.eq.s32.totalorder %s29, 2
      %p308 = por %p306, %p307
      %p309 = scmp.ne.s32.totalorder %s301, %s304
      %p310 = scmp.eq.s32.totalorder %s29, 0
      %p311 = por %p309, %p310
      %p312 = scmp.ne.s32.totalorder %s301, %s304
      %p313 = scmp.eq.s32.totalorder %s34, 2
      %p314 = por %p312, %p313
      %p315 = scmp.ne.s32.totalorder %s304, %s305
      %p316 = scmp.eq.s32.totalorder %s34, 0
      %p317 = por %p315, %p316
      %p318 = scmp.ne.s32.totalorder %s304, %s305
      %p319 = scmp.eq.s32.totalorder %s35, 2
      %p320 = por %p318, %p319
      %p322 = scmp.ne.s32.totalorder %s305, %s321
      %p323 = scmp.eq.s32.totalorder %s35, 0
      %p324 = por %p322, %p323
      %s325 = ssub.s32 %s36, %s48
      %p326 = scmp.eq.s32.totalorder %s325, 0
      %s328 = sadd.s32 %s327, 1
      %s329 = scalar_select %p326, %s327, %s328
      %p332 = pneg %p326
      %p333 = scmp.eq.s32.totalorder %s29, 2
      %p334 = por %p332, %p333
      %p335 = scmp.ne.s32.totalorder %s327, %s330
      %p336 = scmp.eq.s32.totalorder %s29, 0
      %p337 = por %p335, %p336
      %p338 = scmp.ne.s32.totalorder %s327, %s330
      %p339 = scmp.eq.s32.totalorder %s34, 2
      %p340 = por %p338, %p339
      %p341 = scmp.ne.s32.totalorder %s330, %s331
      %p342 = scmp.eq.s32.totalorder %s34, 0
      %p343 = por %p341, %p342
      %p344 = scmp.ne.s32.totalorder %s330, %s331
      %p345 = scmp.eq.s32.totalorder %s35, 2
      %p346 = por %p344, %p345
      %p348 = scmp.ne.s32.totalorder %s331, %s347
      %p349 = scmp.eq.s32.totalorder %s35, 0
      %p350 = por %p348, %p349
      %s351 = ssub.s32 %s36, %s48
      %p352 = scmp.eq.s32.totalorder %s351, 0
      %s354 = sadd.s32 %s353, 1
      %s355 = scalar_select %p352, %s353, %s354
      %p358 = pneg %p352
      %p359 = scmp.eq.s32.totalorder %s29, 2
      %p360 = por %p358, %p359
      %p361 = scmp.ne.s32.totalorder %s353, %s356
      %p362 = scmp.eq.s32.totalorder %s29, 0
      %p363 = por %p361, %p362
      %p364 = scmp.ne.s32.totalorder %s353, %s356
      %p365 = scmp.eq.s32.totalorder %s34, 2
      %p366 = por %p364, %p365
      %p367 = scmp.ne.s32.totalorder %s356, %s357
      %p368 = scmp.eq.s32.totalorder %s34, 0
      %p369 = por %p367, %p368
      %p370 = scmp.ne.s32.totalorder %s356, %s357
      %p371 = scmp.eq.s32.totalorder %s35, 2
      %p372 = por %p370, %p371
      %p374 = scmp.ne.s32.totalorder %s357, %s373
      %p375 = scmp.eq.s32.totalorder %s35, 0
      %p376 = por %p374, %p375
      %s378 = sadd.s32 %s377, 1
      %p381 = scmp.eq.s32.totalorder %s29, 2
      %p382 = scmp.ne.s32.totalorder %s377, %s379
      %p383 = scmp.eq.s32.totalorder %s29, 0
      %p384 = por %p382, %p383
      %p385 = scmp.ne.s32.totalorder %s377, %s379
      %p386 = scmp.eq.s32.totalorder %s34, 2
      %p387 = por %p385, %p386
      %p388 = scmp.ne.s32.totalorder %s379, %s380
      %p389 = scmp.eq.s32.totalorder %s34, 0
      %p390 = por %p388, %p389
      %p391 = scmp.ne.s32.totalorder %s379, %s380
      %p392 = scmp.eq.s32.totalorder %s35, 2
      %p393 = por %p391, %p392
      %p395 = scmp.ne.s32.totalorder %s380, %s394
      %p396 = scmp.eq.s32.totalorder %s35, 0
      %p397 = por %p395, %p396
      %p398 = scmp.le.s32.totalorder 1, %s29
      %p399 = scmp.lt.s32.totalorder %s29, 4
      %p400 = pnand %p398, %p399
      %p401 = pneg %p400
      // Predicated region
      $region9: #{tpu_custom_call.1} parent=5 // pred_check
        _
      $region10: #{tpu_custom_call.1} parent=5 // pred_check_branch
        %403 = sbr.rel (%p400) target = $region12
      $region11: #{tpu_custom_call.1} parent=5 // pred_region
        %s404 = ssub.s32 %s29, 1
        // Predicated region
        $region13: #{tpu_custom_call.1} parent=11 // pred_check
          %p405 = pneg %p62
        $region14: #{tpu_custom_call.1} parent=11 // pred_check_branch
          %407 = sbr.rel (%p405) target = $region16
        $region15: #{tpu_custom_call.1} parent=11 // pred_region
          _
        $region16: #{tpu_custom_call.1} parent=11 // pred_fallthru
          _
        // Predicated region
        $region17: #{tpu_custom_call.1} parent=11 // pred_check
          %p408 = pneg %p88
        $region18: #{tpu_custom_call.1} parent=11 // pred_check_branch
          %410 = sbr.rel (%p408) target = $region20
        $region19: #{tpu_custom_call.1} parent=11 // pred_region
          %s411 = smul.u32 4, %s39
          %p412 = scmp.lt.s32.totalorder %s411, 3
          %s413 = scalar_select %p412, %s411, 3
          %s414 = smul.addr %s413, 4
          %s415 = scalar_lea.vmem %s1, %s414
          %s416 = smul.u32 4, %s39
        $region20: #{tpu_custom_call.1} parent=11 // pred_fallthru
          _
        // Predicated region
        $region21: #{tpu_custom_call.1} parent=11 // pred_check
          %p417 = pneg %p114
        $region22: #{tpu_custom_call.1} parent=11 // pred_check_branch
          %419 = sbr.rel (%p417) target = $region24
        $region23: #{tpu_custom_call.1} parent=11 // pred_region
          %s420 = smul.u32 4, %s39
          %p421 = scmp.lt.s32.totalorder %s420, 3
          %s422 = scalar_select %p421, %s420, 3
          %s423 = smul.addr %s422, 4
          %s424 = scalar_lea.vmem %s2, %s423
          %s425 = smul.u32 4, %s39
        $region24: #{tpu_custom_call.1} parent=11 // pred_fallthru
          _
        // Predicated region
        $region25: #{tpu_custom_call.1} parent=11 // pred_check
          %p426 = pneg %p135
        $region26: #{tpu_custom_call.1} parent=11 // pred_check_branch
          %428 = sbr.rel (%p426) target = $region28
        $region27: #{tpu_custom_call.1} parent=11 // pred_region
          _
        $region28: #{tpu_custom_call.1} parent=11 // pred_fallthru
          _
        // Predicated region
        $region29: #{tpu_custom_call.1} parent=11 // pred_check
          %p429 = pneg %p161
        $region30: #{tpu_custom_call.1} parent=11 // pred_check_branch
          %431 = sbr.rel (%p429) target = $region32
        $region31: #{tpu_custom_call.1} parent=11 // pred_region
          %s432 = smul.u32 4, %s39
          %p433 = scmp.lt.s32.totalorder %s432, 3
          %s434 = scalar_select %p433, %s432, 3
          %s435 = smul.addr %s434, 8
          %s436 = scalar_lea.vmem %s4, %s435
          %s437 = smul.u32 4, %s39
        $region32: #{tpu_custom_call.1} parent=11 // pred_fallthru
          _
      $region12: #{tpu_custom_call.1} parent=5 // pred_fallthru
        _
      %p438 = scmp.lt.s32.totalorder %s29, 3
      // Predicated region
      $region33: #{tpu_custom_call.1} parent=5 // pred_check
        %p439 = pneg %p438
      $region34: #{tpu_custom_call.1} parent=5 // pred_check_branch
        %441 = sbr.rel (%p439) target = $region36
      $region35: #{tpu_custom_call.1} parent=5 // pred_region
        // Predicated region
        $region37: #{tpu_custom_call.1} parent=35 // pred_check
          %p442 = pneg %p181
        $region38: #{tpu_custom_call.1} parent=35 // pred_check_branch
          %444 = sbr.rel (%p442) target = $region40
        $region39: #{tpu_custom_call.1} parent=35 // pred_region
          %s445 = sand.u32 %s171, 1
          %s446 = scalar_lea.sflag [#allocation6], %s445
          %s447 = sand.u32 %s171, 1
          %s448 = smul.addr %s447, 64
          %s449 = scalar_lea.vmem [#allocation5], %s448
          %s451 = ssub.s32 1024, 1024
          %452 = vsyncadd %s446, %s451
          %s453 = smul.addr %s36, 16
          %s454 = smul.addr %s453, 64
          %s455 = scalar_lea.hbm %s5, %s454
          %s456 = sshll.u32 %s449, 4
          %s457 = int_to_ptr.vmem [resolvable:$true] %s456
          %462 = dma.hbm_to_vmem [thread:$0]  %s455, 1024, %s457, %s446, 64, 64, 4
        $region40: #{tpu_custom_call.1} parent=35 // pred_fallthru
          _
        // Predicated region
        $region41: #{tpu_custom_call.1} parent=35 // pred_check
          %p463 = pneg %p207
        $region42: #{tpu_custom_call.1} parent=35 // pred_check_branch
          %465 = sbr.rel (%p463) target = $region44
        $region43: #{tpu_custom_call.1} parent=35 // pred_region
          %p466 = scmp.lt.s32.totalorder %s36, 2
          %s467 = scalar_select %p466, %s36, 2
          %s468 = scalar_lea.vmem %s6, %s467
        $region44: #{tpu_custom_call.1} parent=35 // pred_fallthru
          _
        // Predicated region
        $region45: #{tpu_custom_call.1} parent=35 // pred_check
          %p469 = pneg %p233
        $region46: #{tpu_custom_call.1} parent=35 // pred_check_branch
          %471 = sbr.rel (%p469) target = $region48
        $region47: #{tpu_custom_call.1} parent=35 // pred_region
          %s472 = sand.u32 %s29, 1
          %s473 = scalar_lea.sflag [#allocation9], %s472
          %s474 = sand.u32 %s223, 1
          %s475 = smul.addr %s474, 64
          %s476 = scalar_lea.vmem [#allocation8], %s475
          %s478 = ssub.s32 1024, 1024
          %479 = vsyncadd %s473, %s478
          %s480 = smul.addr %s36, 16
          %s481 = smul.addr %s480, 64
          %s482 = scalar_lea.hbm %s7, %s481
          %s483 = sshll.u32 %s476, 4
          %s484 = int_to_ptr.vmem [resolvable:$true] %s483
          %489 = dma.hbm_to_vmem [thread:$0]  %s482, 1024, %s484, %s473, 64, 64, 4
        $region48: #{tpu_custom_call.1} parent=35 // pred_fallthru
          _
        // Predicated region
        $region49: #{tpu_custom_call.1} parent=35 // pred_check
          %p490 = pneg %p259
        $region50: #{tpu_custom_call.1} parent=35 // pred_check_branch
          %492 = sbr.rel (%p490) target = $region52
        $region51: #{tpu_custom_call.1} parent=35 // pred_region
          %p493 = scmp.lt.s32.totalorder %s36, 2
          %s494 = scalar_select %p493, %s36, 2
          %s495 = scalar_lea.vmem %s8, %s494
        $region52: #{tpu_custom_call.1} parent=35 // pred_fallthru
          _
        // Predicated region
        $region53: #{tpu_custom_call.1} parent=35 // pred_check
          %p496 = pneg %p285
        $region54: #{tpu_custom_call.1} parent=35 // pred_check_branch
          %498 = sbr.rel (%p496) target = $region56
        $region55: #{tpu_custom_call.1} parent=35 // pred_region
          %s499 = sand.u32 %s29, 1
          %s500 = scalar_lea.sflag [#allocation9], %s499
          %s501 = sand.u32 %s275, 1
          %s502 = smul.addr %s501, 64
          %s503 = scalar_lea.vmem [#allocation10], %s502
          %s505 = ssub.s32 1024, 1024
          %506 = vsyncadd %s500, %s505
          %s507 = smul.addr %s36, 16
          %s508 = smul.addr %s507, 64
          %s509 = scalar_lea.hbm %s9, %s508
          %s510 = sshll.u32 %s503, 4
          %s511 = int_to_ptr.vmem [resolvable:$true] %s510
          %516 = dma.hbm_to_vmem [thread:$0]  %s509, 1024, %s511, %s500, 64, 64, 4
        $region56: #{tpu_custom_call.1} parent=35 // pred_fallthru
          _
        // Predicated region
        $region57: #{tpu_custom_call.1} parent=35 // pred_check
          %p517 = pneg %p311
        $region58: #{tpu_custom_call.1} parent=35 // pred_check_branch
          %519 = sbr.rel (%p517) target = $region60
        $region59: #{tpu_custom_call.1} parent=35 // pred_region
          %p520 = scmp.lt.s32.totalorder %s36, 2
          %s521 = scalar_select %p520, %s36, 2
          %s522 = scalar_lea.vmem %s10, %s521
        $region60: #{tpu_custom_call.1} parent=35 // pred_fallthru
          _
        // Predicated region
        $region61: #{tpu_custom_call.1} parent=35 // pred_check
          %p523 = pneg %p337
        $region62: #{tpu_custom_call.1} parent=35 // pred_check_branch
          %525 = sbr.rel (%p523) target = $region64
        $region63: #{tpu_custom_call.1} parent=35 // pred_region
          %s526 = sand.u32 %s327, 1
          %s527 = scalar_lea.sflag [#allocation12], %s526
          %s528 = sand.u32 %s327, 1
          %s529 = smul.addr %s528, 64
          %s530 = scalar_lea.vmem [#allocation11], %s529
          %s532 = ssub.s32 1024, 1024
          %533 = vsyncadd %s527, %s532
          %s534 = smul.addr %s36, 16
          %s535 = smul.addr %s534, 64
          %s536 = scalar_lea.hbm %s11, %s535
          %s537 = sshll.u32 %s530, 4
          %s538 = int_to_ptr.vmem [resolvable:$true] %s537
          %543 = dma.hbm_to_vmem [thread:$0]  %s536, 1024, %s538, %s527, 64, 64, 4
        $region64: #{tpu_custom_call.1} parent=35 // pred_fallthru
          _
        // Predicated region
        $region65: #{tpu_custom_call.1} parent=35 // pred_check
          %p544 = pneg %p363
        $region66: #{tpu_custom_call.1} parent=35 // pred_check_branch
          %546 = sbr.rel (%p544) target = $region68
        $region67: #{tpu_custom_call.1} parent=35 // pred_region
          %p547 = scmp.lt.s32.totalorder %s36, 2
          %s548 = scalar_select %p547, %s36, 2
          %s549 = scalar_lea.vmem %s12, %s548
        $region68: #{tpu_custom_call.1} parent=35 // pred_fallthru
          _
      $region36: #{tpu_custom_call.1} parent=5 // pred_fallthru
        _
      %p550 = scmp.le.s32.totalorder 1, %s29
      %p551 = scmp.lt.s32.totalorder %s29, 4
      %p552 = pnand %p550, %p551
      %p553 = pneg %p552
      // Predicated region
      $region69: #{tpu_custom_call.1} parent=5 // pred_check
        _
      $region70: #{tpu_custom_call.1} parent=5 // pred_check_branch
        %555 = sbr.rel (%p552) target = $region72
      $region71: #{tpu_custom_call.1} parent=5 // pred_region
        %s556 = ssub.s32 %s29, 1
        %s557 = sand.u32 %s174, 1
        %s558 = scalar_lea.sflag [#allocation6], %s557
        %s559 = sand.u32 %s174, 1
        %s560 = smul.addr %s559, 64
        %s561 = scalar_lea.vmem [#allocation5], %s560
        // Predicated region
        $region73: #{tpu_custom_call.1} parent=71 // pred_check
          %p562 = pneg %p187
        $region74: #{tpu_custom_call.1} parent=71 // pred_check_branch
          %564 = sbr.rel (%p562) target = $region76
        $region75: #{tpu_custom_call.1} parent=71 // pred_region
          %565 = dma.done %s558, 1024
        $region76: #{tpu_custom_call.1} parent=71 // pred_fallthru
          _
        %s566 = sand.u32 %s34, 1
        %s567 = scalar_lea.sflag [#allocation9], %s566
        %s568 = sand.u32 %s226, 1
        %s569 = smul.addr %s568, 64
        %s570 = scalar_lea.vmem [#allocation8], %s569
        // Predicated region
        $region77: #{tpu_custom_call.1} parent=71 // pred_check
          %p571 = pneg %p239
        $region78: #{tpu_custom_call.1} parent=71 // pred_check_branch
          %573 = sbr.rel (%p571) target = $region80
        $region79: #{tpu_custom_call.1} parent=71 // pred_region
          %574 = dma.done %s567, 1024
        $region80: #{tpu_custom_call.1} parent=71 // pred_fallthru
          _
        %s575 = sand.u32 %s34, 1
        %s576 = scalar_lea.sflag [#allocation9], %s575
        %s577 = sand.u32 %s278, 1
        %s578 = smul.addr %s577, 64
        %s579 = scalar_lea.vmem [#allocation10], %s578
        // Predicated region
        $region81: #{tpu_custom_call.1} parent=71 // pred_check
          %p580 = pneg %p291
        $region82: #{tpu_custom_call.1} parent=71 // pred_check_branch
          %582 = sbr.rel (%p580) target = $region84
        $region83: #{tpu_custom_call.1} parent=71 // pred_region
          %583 = dma.done %s576, 1024
        $region84: #{tpu_custom_call.1} parent=71 // pred_fallthru
          _
        %s584 = sand.u32 %s330, 1
        %s585 = scalar_lea.sflag [#allocation12], %s584
        %s586 = sand.u32 %s330, 1
        %s587 = smul.addr %s586, 64
        %s588 = scalar_lea.vmem [#allocation11], %s587
        // Predicated region
        $region85: #{tpu_custom_call.1} parent=71 // pred_check
          %p589 = pneg %p343
        $region86: #{tpu_custom_call.1} parent=71 // pred_check_branch
          %591 = sbr.rel (%p589) target = $region88
        $region87: #{tpu_custom_call.1} parent=71 // pred_region
          %592 = dma.done %s585, 1024
        $region88: #{tpu_custom_call.1} parent=71 // pred_fallthru
          _
        %p593 = pneg %p62
        %p594 = pneg %p59
        %s595 = smul.u32 4, %s39
        %p596 = scmp.lt.s32.totalorder %s595, 3
        %s597 = scalar_select %p596, %s595, 3
        %s598 = smul.addr %s597, 4
        %s599 = scalar_lea.vmem %s1, %s598
        %p600 = pneg %p88
        %p601 = pneg %p85
        %s602 = smul.u32 4, %s39
        %p603 = scmp.lt.s32.totalorder %s602, 3
        %s604 = scalar_select %p603, %s602, 3
        %s605 = smul.addr %s604, 4
        %s606 = scalar_lea.vmem %s2, %s605
        %p607 = pneg %p114
        %p608 = pneg %p111
        %p609 = pneg %p135
        %p610 = pneg %p132
        %s611 = smul.u32 4, %s39
        %p612 = scmp.lt.s32.totalorder %s611, 3
        %s613 = scalar_select %p612, %s611, 3
        %s614 = smul.addr %s613, 8
        %s615 = scalar_lea.vmem %s4, %s614
        %p616 = pneg %p161
        %p617 = pneg %p158
        %s618 = sand.u32 %s174, 1
        %s619 = scalar_lea.sflag [#allocation6], %s618
        %s620 = sand.u32 %s174, 1
        %s621 = smul.addr %s620, 64
        %s622 = scalar_lea.vmem [#allocation5], %s621
        %p623 = pneg %p187
        %p624 = pneg %p184
        %p625 = scmp.lt.s32.totalorder %s38, 2
        %s626 = scalar_select %p625, %s38, 2
        %s627 = scalar_lea.vmem %s6, %s626
        %p628 = pneg %p213
        %p629 = pneg %p210
        %s630 = sand.u32 %s34, 1
        %s631 = scalar_lea.sflag [#allocation9], %s630
        %s632 = sand.u32 %s226, 1
        %s633 = smul.addr %s632, 64
        %s634 = scalar_lea.vmem [#allocation8], %s633
        %p635 = pneg %p239
        %p636 = pneg %p236
        %p637 = scmp.lt.s32.totalorder %s38, 2
        %s638 = scalar_select %p637, %s38, 2
        %s639 = scalar_lea.vmem %s8, %s638
        %p640 = pneg %p265
        %p641 = pneg %p262
        %s642 = sand.u32 %s34, 1
        %s643 = scalar_lea.sflag [#allocation9], %s642
        %s644 = sand.u32 %s278, 1
        %s645 = smul.addr %s644, 64
        %s646 = scalar_lea.vmem [#allocation10], %s645
        %p647 = pneg %p291
        %p648 = pneg %p288
        %p649 = scmp.lt.s32.totalorder %s38, 2
        %s650 = scalar_select %p649, %s38, 2
        %s651 = scalar_lea.vmem %s10, %s650
        %p652 = pneg %p317
        %p653 = pneg %p314
        %s654 = sand.u32 %s330, 1
        %s655 = scalar_lea.sflag [#allocation12], %s654
        %s656 = sand.u32 %s330, 1
        %s657 = smul.addr %s656, 64
        %s658 = scalar_lea.vmem [#allocation11], %s657
        %p659 = pneg %p343
        %p660 = pneg %p340
        %p661 = scmp.lt.s32.totalorder %s38, 2
        %s662 = scalar_select %p661, %s38, 2
        %s663 = scalar_lea.vmem %s12, %s662
        %p664 = pneg %p369
        %p665 = pneg %p366
        %p666 = pneg %p390
        %p667 = pneg %p387
        %s668 = smul.u32 4, %s39
        %p669 = scmp.lt.s32.totalorder %s668, 3
        %s670 = scalar_select %p669, %s668, 3
        %s671 = smul.addr %s670, 4
        %s672 = scalar_lea.vmem %s1, %s671
        %s673 = smul.u32 4, %s39
        %s674 = smul.u32 4, %s39
        %p675 = scmp.lt.s32.totalorder %s674, 3
        %s676 = scalar_select %p675, %s674, 3
        %s677 = smul.addr %s676, 4
        %s678 = scalar_lea.vmem %s2, %s677
        %s679 = smul.u32 4, %s39
        %s680 = smul.u32 4, %s39
        %p681 = scmp.lt.s32.totalorder %s680, 3
        %s682 = scalar_select %p681, %s680, 3
        %s683 = smul.addr %s682, 8
        %s684 = scalar_lea.vmem %s4, %s683
        %s685 = smul.u32 4, %s39
        %p686 = scmp.lt.s32.totalorder %s38, 2
        %s687 = scalar_select %p686, %s38, 2
        %s688 = scalar_lea.vmem %s6, %s687
        %p689 = scmp.lt.s32.totalorder %s38, 2
        %s690 = scalar_select %p689, %s38, 2
        %s691 = scalar_lea.vmem %s8, %s690
        %p692 = scmp.lt.s32.totalorder %s38, 2
        %s693 = scalar_select %p692, %s38, 2
        %s694 = scalar_lea.vmem %s10, %s693
        %p695 = scmp.lt.s32.totalorder %s38, 2
        %s696 = scalar_select %p695, %s38, 2
        %s697 = scalar_lea.vmem %s12, %s696
        %p699 = scmp.eq.s32.totalorder %s38, 0
        %p700 = scmp.eq.s32.totalorder %s39, 0
        %p701 = pnand %p699, %p700
        %p702 = pneg %p701
        // Predicated region
        $region89: #{tpu_custom_call.1} parent=71 // pred_check
          _
        $region90: #{tpu_custom_call.1} parent=71 // pred_check_branch
          %704 = sbr.rel (%p701) target = $region92
        $region91: #{tpu_custom_call.1} parent=71 // pred_region
          %v705 = vld [vmem:[%s0] sm:$0xff]
          %v706 = vld [vmem:[%s0 + $0x8] sm:$0xff]
          %707 = vst [vmem:[#allocation13] sm:$0xff] %v705
          %708 = vst [vmem:[#allocation13 + $0x8] sm:$0xff] %v706
          %709 = vst [vmem:[#allocation4] sm:$0x3] 0.0
        $region92: #{tpu_custom_call.1} parent=71 // pred_fallthru
          _
        // Predicated region
        $region93: #{tpu_custom_call.1} parent=71 // pred_check
          %p710 = pneg %p700
        $region94: #{tpu_custom_call.1} parent=71 // pred_check_branch
          %712 = sbr.rel (%p710) target = $region96
        $region95: #{tpu_custom_call.1} parent=71 // pred_region
          %v713 = vld [vmem:[#allocation13] sm:$0xff]
          %v714 = vld [vmem:[#allocation13 + $0x8] sm:$0xff]
          %715 = vst [vmem:[#allocation2] sm:$0xff] %v713
          %716 = vst [vmem:[#allocation2 + $0x8] sm:$0xff] %v714
          %717 = vst [vmem:[#allocation3] sm:$0xff] 0.0
          %718 = vst [vmem:[#allocation3 + $0x8] sm:$0xff] 0.0
        $region96: #{tpu_custom_call.1} parent=71 // pred_fallthru
          _
        %p719 = scmp.gt.s32.totalorder %s38, 0
        %p720 = pnand %p700, %p719
        %p721 = pneg %p720
        // Predicated region
        $region97: #{tpu_custom_call.1} parent=71 // pred_check
          _
        $region98: #{tpu_custom_call.1} parent=71 // pred_check_branch
          %723 = sbr.rel (%p720) target = $region100
        $region99: #{tpu_custom_call.1} parent=71 // pred_region
          %v724 = vld [vmem:[%s3] sm:$0xf]
          %v725 = vld [vmem:[%s3 + $0x4] sm:$0xf]
          %v726 = vld [vmem:[#allocation4] sm:$0x3]
          %v727 = vpack.c.bf16 %v726, %v726
          %v730 = vunpack.c.l.b16 %v724
          %v731 = vunpack.c.l.b16 %v725
          %v732 = vpack.c.b16 %v731, %v730
          %vm733 = vcmask 15360
          %v735 = vsel %vm733, %v732, 0
          %vm737 = vcmask 1040384
          %v739 = vsel %vm737, %v727, 0
          %741 = vmatprep.subr.bf16.mxu0 0
          %742 = vmatpush1.bf16.msra.mxu0 %v739
          %743 = vmatprep.subr.bf16.mxu0 0
          %744 = vmatpush1.bf16.msra.mxu0 0
          %745 = vmatprep.subr.bf16.mxu0 0
          %746 = vmatpush1.bf16.msra.mxu0 0
          %747 = vmatprep.subr.bf16.mxu0 0
          %748 = vmatpush1.bf16.msra.mxu0 0
          %749 = vmatprep.subr.bf16.mxu0 0
          %750 = vmatpush1.bf16.msra.mxu0 0
          %751 = vmatprep.subr.bf16.mxu0 0
          %752 = vmatpush1.bf16.msra.mxu0 0
          %753 = vmatprep.subr.bf16.mxu0 0
          %754 = vmatpush1.bf16.msra.mxu0 0
          %755 = vmatprep.subr.bf16.mxu0 0
          %756 = vmatpush1.bf16.msra.mxu0 0
          %757 = vmatprep.subr.bf16.mxu0 0
          %758 = vmatpush1.bf16.msra.mxu0 0
          %759 = vmatprep.subr.bf16.mxu0 0
          %760 = vmatpush1.bf16.msra.mxu0 0
          %761 = vmatprep.subr.bf16.mxu0 0
          %762 = vmatpush1.bf16.msra.mxu0 0
          %763 = vmatprep.subr.bf16.mxu0 0
          %764 = vmatpush1.bf16.msra.mxu0 0
          %765 = vmatprep.subr.bf16.mxu0 0
          %766 = vmatpush1.bf16.msra.mxu0 0
          %767 = vmatprep.subr.bf16.mxu0 0
          %768 = vmatpush1.bf16.msra.mxu0 0
          %769 = vmatprep.subr.bf16.mxu0 0
          %770 = vmatpush1.bf16.msra.mxu0 0
          %771 = vmatprep.subr.bf16.mxu0 0
          %772 = vmatpush1.bf16.msra.mxu0 0
          %773 = vmatprep.mubr.bf16.mxu0 0
          %774 = vmatmul.mubr.bf16.gmra.mrb[0].mxu0 %v735
          %v775 = vpop.f32.mrb[0].mxu0
          %v776 = vadd.f32 0.0, %v775
          %v777 = vpop.f32.mrb[0].mxu0
          %v778 = vpop.f32.mrb[0].mxu0
          %v779 = vadd.f32 0.0, %v778
          %v780 = vpop.f32.mrb[0].mxu0
          %781 = vdwg.mxu0
          %v782 = vld [vmem:[#allocation2] sm:$0xff]
          %v783 = vld [vmem:[#allocation2 + $0x8] sm:$0xff]
          %v784 = vadd.f32 %v782, %v776
          %v785 = vadd.f32 %v783, %v779
          %786 = vst [vmem:[#allocation2] sm:$0xff] %v784
          %787 = vst [vmem:[#allocation2 + $0x8] sm:$0xff] %v785
        $region100: #{tpu_custom_call.1} parent=71 // pred_fallthru
          _
        %v788 = vld [vmem:[#allocation2] sm:$0xff]
        %v789 = vld [vmem:[#allocation2 + $0x8] sm:$0xff]
        %v790 = vpack.c.bf16 %v789, %v788
        %v791 = vld [vmem:[%s672] sm:$0xf]
        %v792 = vld [vmem:[%s672 + $0x4] sm:$0xf]
        %v793 = vld [vmem:[%s672 + $0x8] sm:$0xf]
        %v794 = vld [vmem:[%s672 + $0xc] sm:$0xf]
        %v795 = vld [vmem:[%s684] sm:$0xff]
        %v796 = vld [vmem:[%s684 + $0x8] sm:$0xff]
        %v797 = vld [vmem:[%s684 + $0x10] sm:$0xff]
        %v798 = vld [vmem:[%s684 + $0x18] sm:$0xff]
        %800 = vset.pattern.permute.xlu0 0
        %801 = vperm.xlu0 %800, %v795
        %v802 = vpop.permute.xlu0 %801
        %805 = vset.pattern.permute.xlu0 0
        %806 = vperm.xlu0 %805, %v796
        %v807 = vpop.permute.xlu0 %806
        %810 = vset.pattern.permute.xlu0 0
        %811 = vperm.xlu0 %810, %v797
        %v812 = vpop.permute.xlu0 %811
        %815 = vset.pattern.permute.xlu0 0
        %816 = vperm.xlu0 %815, %v798
        %v817 = vpop.permute.xlu0 %816
        %v823 = vunpack.c.l.b16 %v791
        %v824 = vunpack.c.l.b16 %v792
        %v825 = vunpack.c.l.b16 %v793
        %v826 = vunpack.c.l.b16 %v794
        %v827 = vpack.c.b16 %v824, %v823
        %v828 = vpack.c.b16 %v826, %v825
        %vm829 = vcmask 130048
        %v831 = vsel %vm829, %v827, 0
        %v834 = vsel %vm829, %v828, 0
        %836 = vmatprep.subr.bf16.mxu0 0
        %837 = vmatpush1.bf16.msra.mxu0 %v790
        %838 = vmatprep.subr.bf16.mxu0 0
        %839 = vmatpush1.bf16.msra.mxu0 0
        %840 = vmatprep.subr.bf16.mxu0 0
        %841 = vmatpush1.bf16.msra.mxu0 0
        %842 = vmatprep.subr.bf16.mxu0 0
        %843 = vmatpush1.bf16.msra.mxu0 0
        %844 = vmatprep.subr.bf16.mxu0 0
        %845 = vmatpush1.bf16.msra.mxu0 0
        %846 = vmatprep.subr.bf16.mxu0 0
        %847 = vmatpush1.bf16.msra.mxu0 0
        %848 = vmatprep.subr.bf16.mxu0 0
        %849 = vmatpush1.bf16.msra.mxu0 0
        %850 = vmatprep.subr.bf16.mxu0 0
        %851 = vmatpush1.bf16.msra.mxu0 0
        %852 = vmatprep.subr.bf16.mxu0 0
        %853 = vmatpush1.bf16.msra.mxu0 0
        %854 = vmatprep.subr.bf16.mxu0 0
        %855 = vmatpush1.bf16.msra.mxu0 0
        %856 = vmatprep.subr.bf16.mxu0 0
        %857 = vmatpush1.bf16.msra.mxu0 0
        %858 = vmatprep.subr.bf16.mxu0 0
        %859 = vmatpush1.bf16.msra.mxu0 0
        %860 = vmatprep.subr.bf16.mxu0 0
        %861 = vmatpush1.bf16.msra.mxu0 0
        %862 = vmatprep.subr.bf16.mxu0 0
        %863 = vmatpush1.bf16.msra.mxu0 0
        %864 = vmatprep.subr.bf16.mxu0 0
        %865 = vmatpush1.bf16.msra.mxu0 0
        %866 = vmatprep.subr.bf16.mxu0 0
        %867 = vmatpush1.bf16.msra.mxu0 0
        %868 = vmatprep.mubr.bf16.mxu0 0
        %869 = vmatmul.mubr.bf16.gmra.mrb[0].mxu0 %v831
        %v870 = vpop.f32.mrb[0].mxu0
        %v871 = vadd.f32 %v802, %v870
        %v872 = vpop.f32.mrb[0].mxu0
        %v873 = vpop.f32.mrb[0].mxu0
        %v874 = vadd.f32 %v807, %v873
        %v875 = vpop.f32.mrb[0].mxu0
        %876 = vmatprep.mubr.bf16.mxu0 0
        %877 = vmatmul.mubr.bf16.gmra.mrb[0].mxu0 %v834
        %v878 = vpop.f32.mrb[0].mxu0
        %v879 = vadd.f32 %v812, %v878
        %v880 = vpop.f32.mrb[0].mxu0
        %v881 = vpop.f32.mrb[0].mxu0
        %v882 = vadd.f32 %v817, %v881
        %v883 = vpop.f32.mrb[0].mxu0
        %884 = vdwg.mxu0
        %v885 = vmax.f32 %v871, 0.0
        %v886 = vmax.f32 %v874, 0.0
        %v887 = vmax.f32 %v879, 0.0
        %v888 = vmax.f32 %v882, 0.0
        %v889 = vld [vmem:[#allocation3] sm:$0xff]
        %v890 = vld [vmem:[#allocation3 + $0x8] sm:$0xff]
        %v891 = vld [vmem:[%s678] sm:$0xf]
        %v892 = vld [vmem:[%s678 + $0x4] sm:$0xf]
        %v893 = vld [vmem:[%s678 + $0x8] sm:$0xf]
        %v894 = vld [vmem:[%s678 + $0xc] sm:$0xf]
        %v895 = vpack.c.bf16 %v886, %v885
        %v896 = vpack.c.bf16 %v888, %v887
        %v901 = vunpack.c.l.b16 %v891
        %v902 = vunpack.c.l.b16 %v892
        %v903 = vunpack.c.l.b16 %v893
        %v904 = vunpack.c.l.b16 %v894
        %v905 = vpack.c.b16 %v902, %v901
        %v906 = vpack.c.b16 %v904, %v903
        %909 = vxpose.xlu0.c.b16.start [1/8] %v905, 128
        %910 = vxpose.xlu0.c.b16.cont [2/8] %v906, 128
        %911 = vxpose.xlu0.c.b16.cont [3/8] 0, 128
        %912 = vxpose.xlu0.c.b16.cont [4/8] 0, 128
        %913 = vxpose.xlu0.c.b16.cont [5/8] 0, 128
        %914 = vxpose.xlu0.c.b16.cont [6/8] 0, 128
        %915 = vxpose.xlu0.c.b16.cont [7/8] 0, 128
        %916 = vxpose.xlu0.c.b16.end [8/8] 0, 128
        %v917 = vpop.trf.xlu0
        %v918 = vpop.trf.xlu0
        %v919 = vpop.trf.xlu0
        %v920 = vpop.trf.xlu0
        %v921 = vpop.trf.xlu0
        %v922 = vpop.trf.xlu0
        %v923 = vpop.trf.xlu0
        %v924 = vpop.trf.xlu0
        %vm925 = vcmask 261120
        %v927 = vsel %vm925, %v917, 0
        %929 = vmatprep.subr.bf16.mxu0 0
        %930 = vmatpush1.bf16.msra.mxu0 %v895
        %931 = vmatprep.subr.bf16.mxu0 0
        %932 = vmatpush1.bf16.msra.mxu0 %v896
        %933 = vmatprep.subr.bf16.mxu0 0
        %934 = vmatpush1.bf16.msra.mxu0 0
        %935 = vmatprep.subr.bf16.mxu0 0
        %936 = vmatpush1.bf16.msra.mxu0 0
        %937 = vmatprep.subr.bf16.mxu0 0
        %938 = vmatpush1.bf16.msra.mxu0 0
        %939 = vmatprep.subr.bf16.mxu0 0
        %940 = vmatpush1.bf16.msra.mxu0 0
        %941 = vmatprep.subr.bf16.mxu0 0
        %942 = vmatpush1.bf16.msra.mxu0 0
        %943 = vmatprep.subr.bf16.mxu0 0
        %944 = vmatpush1.bf16.msra.mxu0 0
        %945 = vmatprep.subr.bf16.mxu0 0
        %946 = vmatpush1.bf16.msra.mxu0 0
        %947 = vmatprep.subr.bf16.mxu0 0
        %948 = vmatpush1.bf16.msra.mxu0 0
        %949 = vmatprep.subr.bf16.mxu0 0
        %950 = vmatpush1.bf16.msra.mxu0 0
        %951 = vmatprep.subr.bf16.mxu0 0
        %952 = vmatpush1.bf16.msra.mxu0 0
        %953 = vmatprep.subr.bf16.mxu0 0
        %954 = vmatpush1.bf16.msra.mxu0 0
        %955 = vmatprep.subr.bf16.mxu0 0
        %956 = vmatpush1.bf16.msra.mxu0 0
        %957 = vmatprep.subr.bf16.mxu0 0
        %958 = vmatpush1.bf16.msra.mxu0 0
        %959 = vmatprep.subr.bf16.mxu0 0
        %960 = vmatpush1.bf16.msra.mxu0 0
        %961 = vmatprep.mubr.bf16.mxu0 0
        %962 = vmatmul.mubr.bf16.gmra.mrb[0].mxu0 %v927
        %v963 = vpop.f32.mrb[0].mxu0
        %v964 = vadd.f32 0.0, %v963
        %v965 = vpop.f32.mrb[0].mxu0
        %v966 = vpop.f32.mrb[0].mxu0
        %v967 = vadd.f32 0.0, %v966
        %v968 = vpop.f32.mrb[0].mxu0
        %969 = vdwg.mxu0
        %v970 = vadd.f32 %v889, %v964
        %v971 = vadd.f32 %v890, %v967
        %972 = vst [vmem:[#allocation3] sm:$0xff] %v970
        %973 = vst [vmem:[#allocation3 + $0x8] sm:$0xff] %v971
        // Predicated region
        $region101: #{tpu_custom_call.1} parent=71 // pred_check
          %p974 = pneg %p700
        $region102: #{tpu_custom_call.1} parent=71 // pred_check_branch
          %976 = sbr.rel (%p974) target = $region104
        $region103: #{tpu_custom_call.1} parent=71 // pred_region
          %v977 = vld [vmem:[#allocation2] sm:$0xff]
          %v978 = vld [vmem:[#allocation2 + $0x8] sm:$0xff]
          %v979 = vld [vmem:[#allocation3] sm:$0xff]
          %v980 = vld [vmem:[#allocation3 + $0x8] sm:$0xff]
          %v981 = vadd.f32 %v977, %v979
          %v982 = vadd.f32 %v978, %v980
          %v983 = vpack.c.bf16 %v982, %v981
          %v984 = vld [vmem:[%s561] sm:$0xf]
          %v985 = vld [vmem:[%s561 + $0x4] sm:$0xf]
          %v986 = vld [vmem:[%s561 + $0x8] sm:$0xf]
          %v987 = vld [vmem:[%s561 + $0xc] sm:$0xf]
          %v988 = vld [vmem:[%s561 + $0x10] sm:$0xf]
          %v989 = vld [vmem:[%s561 + $0x14] sm:$0xf]
          %v990 = vld [vmem:[%s561 + $0x18] sm:$0xf]
          %v991 = vld [vmem:[%s561 + $0x1c] sm:$0xf]
          %v992 = vld [vmem:[%s561 + $0x20] sm:$0xf]
          %v993 = vld [vmem:[%s561 + $0x24] sm:$0xf]
          %v994 = vld [vmem:[%s561 + $0x28] sm:$0xf]
          %v995 = vld [vmem:[%s561 + $0x2c] sm:$0xf]
          %v996 = vld [vmem:[%s561 + $0x30] sm:$0xf]
          %v997 = vld [vmem:[%s561 + $0x34] sm:$0xf]
          %v998 = vld [vmem:[%s561 + $0x38] sm:$0xf]
          %v999 = vld [vmem:[%s561 + $0x3c] sm:$0xf]
          %v1000 = vld [vmem:[%s688] sm:$0x1]
          %v1002 = vlaneseq
          %v1003 = vshrl.u32 %v1002, 7
          %v1004 = vsub.s32 0, %v1003
          %v1005 = vrot.slane %v1000, %v1004
          %v1023 = vunpack.c.l.b16 %v984
          %v1024 = vunpack.c.l.b16 %v985
          %v1025 = vunpack.c.l.b16 %v986
          %v1026 = vunpack.c.l.b16 %v987
          %v1027 = vunpack.c.l.b16 %v988
          %v1028 = vunpack.c.l.b16 %v989
          %v1029 = vunpack.c.l.b16 %v990
          %v1030 = vunpack.c.l.b16 %v991
          %v1031 = vunpack.c.l.b16 %v992
          %v1032 = vunpack.c.l.b16 %v993
          %v1033 = vunpack.c.l.b16 %v994
          %v1034 = vunpack.c.l.b16 %v995
          %v1035 = vunpack.c.l.b16 %v996
          %v1036 = vunpack.c.l.b16 %v997
          %v1037 = vunpack.c.l.b16 %v998
          %v1038 = vunpack.c.l.b16 %v999
          %v1039 = vpack.c.b16 %v1024, %v1023
          %v1040 = vpack.c.b16 %v1026, %v1025
          %v1041 = vpack.c.b16 %v1028, %v1027
          %v1042 = vpack.c.b16 %v1030, %v1029
          %v1043 = vpack.c.b16 %v1032, %v1031
          %v1044 = vpack.c.b16 %v1034, %v1033
          %v1045 = vpack.c.b16 %v1036, %v1035
          %v1046 = vpack.c.b16 %v1038, %v1037
          %1055 = vmatprep.subr.bf16.mxu0 0
          %1056 = vmatpush1.bf16.msra.mxu0 %v1039
          %1057 = vmatprep.subr.bf16.mxu0 0
          %1058 = vmatpush1.bf16.msra.mxu0 %v1040
          %1059 = vmatprep.subr.bf16.mxu0 0
          %1060 = vmatpush1.bf16.msra.mxu0 %v1041
          %1061 = vmatprep.subr.bf16.mxu0 0
          %1062 = vmatpush1.bf16.msra.mxu0 %v1042
          %1063 = vmatprep.subr.bf16.mxu0 0
          %1064 = vmatpush1.bf16.msra.mxu0 %v1043
          %1065 = vmatprep.subr.bf16.mxu0 0
          %1066 = vmatpush1.bf16.msra.mxu0 %v1044
          %1067 = vmatprep.subr.bf16.mxu0 0
          %1068 = vmatpush1.bf16.msra.mxu0 %v1045
          %1069 = vmatprep.subr.bf16.mxu0 0
          %1070 = vmatpush1.bf16.msra.mxu0 %v1046
          %1071 = vmatprep.subr.bf16.mxu0 0
          %1072 = vmatpush1.bf16.msra.mxu0 0
          %1073 = vmatprep.subr.bf16.mxu0 0
          %1074 = vmatpush1.bf16.msra.mxu0 0
          %1075 = vmatprep.subr.bf16.mxu0 0
          %1076 = vmatpush1.bf16.msra.mxu0 0
          %1077 = vmatprep.subr.bf16.mxu0 0
          %1078 = vmatpush1.bf16.msra.mxu0 0
          %1079 = vmatprep.subr.bf16.mxu0 0
          %1080 = vmatpush1.bf16.msra.mxu0 0
          %1081 = vmatprep.subr.bf16.mxu0 0
          %1082 = vmatpush1.bf16.msra.mxu0 0
          %1083 = vmatprep.subr.bf16.mxu0 0
          %1084 = vmatpush1.bf16.msra.mxu0 0
          %1085 = vmatprep.subr.bf16.mxu0 0
          %1086 = vmatpush1.bf16.msra.mxu0 0
          %1087 = vmatprep.mubr.bf16.mxu0 0
          %1088 = vmatmul.mubr.bf16.gmra.mrb[0].mxu0 %v983
          %v1089 = vpop.f32.mrb[0].mxu0
          %v1090 = vadd.f32 %v1005, %v1089
          %v1091 = vpop.f32.mrb[0].mxu0
          %v1092 = vpop.f32.mrb[0].mxu0
          %v1093 = vadd.f32 %v1005, %v1092
          %v1094 = vpop.f32.mrb[0].mxu0
          %1095 = vdwg.mxu0
          %v1096 = vmax.f32 %v1090, 0.0
          %v1097 = vmax.f32 %v1093, 0.0
          %v1098 = vpack.c.bf16 %v1097, %v1096
          %v1099 = vld [vmem:[%s570] sm:$0xf]
          %v1100 = vld [vmem:[%s570 + $0x4] sm:$0xf]
          %v1101 = vld [vmem:[%s570 + $0x8] sm:$0xf]
          %v1102 = vld [vmem:[%s570 + $0xc] sm:$0xf]
          %v1103 = vld [vmem:[%s570 + $0x10] sm:$0xf]
          %v1104 = vld [vmem:[%s570 + $0x14] sm:$0xf]
          %v1105 = vld [vmem:[%s570 + $0x18] sm:$0xf]
          %v1106 = vld [vmem:[%s570 + $0x1c] sm:$0xf]
          %v1107 = vld [vmem:[%s570 + $0x20] sm:$0xf]
          %v1108 = vld [vmem:[%s570 + $0x24] sm:$0xf]
          %v1109 = vld [vmem:[%s570 + $0x28] sm:$0xf]
          %v1110 = vld [vmem:[%s570 + $0x2c] sm:$0xf]
          %v1111 = vld [vmem:[%s570 + $0x30] sm:$0xf]
          %v1112 = vld [vmem:[%s570 + $0x34] sm:$0xf]
          %v1113 = vld [vmem:[%s570 + $0x38] sm:$0xf]
          %v1114 = vld [vmem:[%s570 + $0x3c] sm:$0xf]
          %v1115 = vld [vmem:[%s691] sm:$0x1]
          %v1117 = vlaneseq
          %v1118 = vshrl.u32 %v1117, 7
          %v1119 = vsub.s32 0, %v1118
          %v1120 = vrot.slane %v1115, %v1119
          %v1138 = vunpack.c.l.b16 %v1099
          %v1139 = vunpack.c.l.b16 %v1100
          %v1140 = vunpack.c.l.b16 %v1101
          %v1141 = vunpack.c.l.b16 %v1102
          %v1142 = vunpack.c.l.b16 %v1103
          %v1143 = vunpack.c.l.b16 %v1104
          %v1144 = vunpack.c.l.b16 %v1105
          %v1145 = vunpack.c.l.b16 %v1106
          %v1146 = vunpack.c.l.b16 %v1107
          %v1147 = vunpack.c.l.b16 %v1108
          %v1148 = vunpack.c.l.b16 %v1109
          %v1149 = vunpack.c.l.b16 %v1110
          %v1150 = vunpack.c.l.b16 %v1111
          %v1151 = vunpack.c.l.b16 %v1112
          %v1152 = vunpack.c.l.b16 %v1113
          %v1153 = vunpack.c.l.b16 %v1114
          %v1154 = vpack.c.b16 %v1139, %v1138
          %v1155 = vpack.c.b16 %v1141, %v1140
          %v1156 = vpack.c.b16 %v1143, %v1142
          %v1157 = vpack.c.b16 %v1145, %v1144
          %v1158 = vpack.c.b16 %v1147, %v1146
          %v1159 = vpack.c.b16 %v1149, %v1148
          %v1160 = vpack.c.b16 %v1151, %v1150
          %v1161 = vpack.c.b16 %v1153, %v1152
          %1170 = vmatprep.subr.bf16.mxu0 0
          %1171 = vmatpush1.bf16.msra.mxu0 %v1154
          %1172 = vmatprep.subr.bf16.mxu0 0
          %1173 = vmatpush1.bf16.msra.mxu0 %v1155
          %1174 = vmatprep.subr.bf16.mxu0 0
          %1175 = vmatpush1.bf16.msra.mxu0 %v1156
          %1176 = vmatprep.subr.bf16.mxu0 0
          %1177 = vmatpush1.bf16.msra.mxu0 %v1157
          %1178 = vmatprep.subr.bf16.mxu0 0
          %1179 = vmatpush1.bf16.msra.mxu0 %v1158
          %1180 = vmatprep.subr.bf16.mxu0 0
          %1181 = vmatpush1.bf16.msra.mxu0 %v1159
          %1182 = vmatprep.subr.bf16.mxu0 0
          %1183 = vmatpush1.bf16.msra.mxu0 %v1160
          %1184 = vmatprep.subr.bf16.mxu0 0
          %1185 = vmatpush1.bf16.msra.mxu0 %v1161
          %1186 = vmatprep.subr.bf16.mxu0 0
          %1187 = vmatpush1.bf16.msra.mxu0 0
          %1188 = vmatprep.subr.bf16.mxu0 0
          %1189 = vmatpush1.bf16.msra.mxu0 0
          %1190 = vmatprep.subr.bf16.mxu0 0
          %1191 = vmatpush1.bf16.msra.mxu0 0
          %1192 = vmatprep.subr.bf16.mxu0 0
          %1193 = vmatpush1.bf16.msra.mxu0 0
          %1194 = vmatprep.subr.bf16.mxu0 0
          %1195 = vmatpush1.bf16.msra.mxu0 0
          %1196 = vmatprep.subr.bf16.mxu0 0
          %1197 = vmatpush1.bf16.msra.mxu0 0
          %1198 = vmatprep.subr.bf16.mxu0 0
          %1199 = vmatpush1.bf16.msra.mxu0 0
          %1200 = vmatprep.subr.bf16.mxu0 0
          %1201 = vmatpush1.bf16.msra.mxu0 0
          %1202 = vmatprep.mubr.bf16.mxu0 0
          %1203 = vmatmul.mubr.bf16.gmra.mrb[0].mxu0 %v1098
          %v1204 = vpop.f32.mrb[0].mxu0
          %v1205 = vadd.f32 %v1120, %v1204
          %v1206 = vpop.f32.mrb[0].mxu0
          %v1207 = vpop.f32.mrb[0].mxu0
          %v1208 = vadd.f32 %v1120, %v1207
          %v1209 = vpop.f32.mrb[0].mxu0
          %1210 = vdwg.mxu0
          %p1211 = scmp.eq.s32.totalorder %s38, 2
          // Predicated region
          $region105: #{tpu_custom_call.1} parent=103 // pred_check
            %p1212 = pneg %p1211
          $region106: #{tpu_custom_call.1} parent=103 // pred_check_branch
            %1214 = sbr.rel (%p1212) target = $region108
          $region107: #{tpu_custom_call.1} parent=103 // pred_region
            %1215 = vst [vmem:[#allocation13] sm:$0xff] %v1205
            %1216 = vst [vmem:[#allocation13 + $0x8] sm:$0xff] %v1208
          $region108: #{tpu_custom_call.1} parent=103 // pred_fallthru
            _
          %p1217 = scmp.lt.s32.totalorder %s38, 2
          // Predicated region
          $region109: #{tpu_custom_call.1} parent=103 // pred_check
            %p1218 = pneg %p1217
          $region110: #{tpu_custom_call.1} parent=103 // pred_check_branch
            %1220 = sbr.rel (%p1218) target = $region112
          $region111: #{tpu_custom_call.1} parent=103 // pred_region
            %v1221 = vmax.f32 %v1205, 0.0
            %v1222 = vmax.f32 %v1208, 0.0
            %1223 = vst [vmem:[#allocation13] sm:$0xff] %v1221
            %1224 = vst [vmem:[#allocation13 + $0x8] sm:$0xff] %v1222
            %v1225 = vld [vmem:[%s3] sm:$0xf]
            %v1226 = vld [vmem:[%s3 + $0x4] sm:$0xf]
            %v1227 = vpack.c.bf16 %v978, %v977
            %v1228 = vld [vmem:[#allocation4] sm:$0x3]
            %v1231 = vunpack.c.l.b16 %v1225
            %v1232 = vunpack.c.l.b16 %v1226
            %v1233 = vpack.c.b16 %v1232, %v1231
            %1235 = vxpose.xlu0.c.b16.start [1/8] %v1233, 128
            %1236 = vxpose.xlu0.c.b16.cont [2/8] 0, 128
            %1237 = vxpose.xlu0.c.b16.cont [3/8] 0, 128
            %1238 = vxpose.xlu0.c.b16.cont [4/8] 0, 128
            %1239 = vxpose.xlu0.c.b16.cont [5/8] 0, 128
            %1240 = vxpose.xlu0.c.b16.cont [6/8] 0, 128
            %1241 = vxpose.xlu0.c.b16.cont [7/8] 0, 128
            %1242 = vxpose.xlu0.c.b16.end [8/8] 0, 128
            %v1243 = vpop.trf.xlu0
            %v1244 = vpop.trf.xlu0
            %v1245 = vpop.trf.xlu0
            %v1246 = vpop.trf.xlu0
            %v1247 = vpop.trf.xlu0
            %v1248 = vpop.trf.xlu0
            %v1249 = vpop.trf.xlu0
            %v1250 = vpop.trf.xlu0
            %v1252 = vsel %vm829, %v1243, 0
            %1254 = vmatprep.subr.bf16.mxu0 0
            %1255 = vmatpush1.bf16.msra.mxu0 %v1227
            %1256 = vmatprep.subr.bf16.mxu0 0
            %1257 = vmatpush1.bf16.msra.mxu0 0
            %1258 = vmatprep.subr.bf16.mxu0 0
            %1259 = vmatpush1.bf16.msra.mxu0 0
            %1260 = vmatprep.subr.bf16.mxu0 0
            %1261 = vmatpush1.bf16.msra.mxu0 0
            %1262 = vmatprep.subr.bf16.mxu0 0
            %1263 = vmatpush1.bf16.msra.mxu0 0
            %1264 = vmatprep.subr.bf16.mxu0 0
            %1265 = vmatpush1.bf16.msra.mxu0 0
            %1266 = vmatprep.subr.bf16.mxu0 0
            %1267 = vmatpush1.bf16.msra.mxu0 0
            %1268 = vmatprep.subr.bf16.mxu0 0
            %1269 = vmatpush1.bf16.msra.mxu0 0
            %1270 = vmatprep.subr.bf16.mxu0 0
            %1271 = vmatpush1.bf16.msra.mxu0 0
            %1272 = vmatprep.subr.bf16.mxu0 0
            %1273 = vmatpush1.bf16.msra.mxu0 0
            %1274 = vmatprep.subr.bf16.mxu0 0
            %1275 = vmatpush1.bf16.msra.mxu0 0
            %1276 = vmatprep.subr.bf16.mxu0 0
            %1277 = vmatpush1.bf16.msra.mxu0 0
            %1278 = vmatprep.subr.bf16.mxu0 0
            %1279 = vmatpush1.bf16.msra.mxu0 0
            %1280 = vmatprep.subr.bf16.mxu0 0
            %1281 = vmatpush1.bf16.msra.mxu0 0
            %1282 = vmatprep.subr.bf16.mxu0 0
            %1283 = vmatpush1.bf16.msra.mxu0 0
            %1284 = vmatprep.subr.bf16.mxu0 0
            %1285 = vmatpush1.bf16.msra.mxu0 0
            %1286 = vmatprep.mubr.bf16.mxu0 0
            %1287 = vmatmul.mubr.bf16.gmra.mrb[0].mxu0 %v1252
            %v1288 = vpop.f32.mrb[0].mxu0
            %v1289 = vadd.f32 %v1228, %v1288
            %v1290 = vpop.f32.mrb[0].mxu0
            %v1291 = vpop.f32.mrb[0].mxu0
            %v1292 = vpop.f32.mrb[0].mxu0
            %1293 = vdwg.mxu0
            %v1294 = vpack.c.bf16 %v1289, %v1289
            %v1295 = vld [vmem:[%s579] sm:$0xf]
            %v1296 = vld [vmem:[%s579 + $0x4] sm:$0xf]
            %v1297 = vld [vmem:[%s579 + $0x8] sm:$0xf]
            %v1298 = vld [vmem:[%s579 + $0xc] sm:$0xf]
            %v1299 = vld [vmem:[%s579 + $0x10] sm:$0xf]
            %v1300 = vld [vmem:[%s579 + $0x14] sm:$0xf]
            %v1301 = vld [vmem:[%s579 + $0x18] sm:$0xf]
            %v1302 = vld [vmem:[%s579 + $0x1c] sm:$0xf]
            %v1303 = vld [vmem:[%s579 + $0x20] sm:$0xf]
            %v1304 = vld [vmem:[%s579 + $0x24] sm:$0xf]
            %v1305 = vld [vmem:[%s579 + $0x28] sm:$0xf]
            %v1306 = vld [vmem:[%s579 + $0x2c] sm:$0xf]
            %v1307 = vld [vmem:[%s579 + $0x30] sm:$0xf]
            %v1308 = vld [vmem:[%s579 + $0x34] sm:$0xf]
            %v1309 = vld [vmem:[%s579 + $0x38] sm:$0xf]
            %v1310 = vld [vmem:[%s579 + $0x3c] sm:$0xf]
            %v1311 = vld [vmem:[%s694] sm:$0x1]
            %v1313 = vlaneseq
            %v1314 = vshrl.u32 %v1313, 7
            %v1315 = vsub.s32 0, %v1314
            %v1316 = vrot.slane %v1311, %v1315
            %v1334 = vunpack.c.l.b16 %v1295
            %v1335 = vunpack.c.l.b16 %v1296
            %v1336 = vunpack.c.l.b16 %v1297
            %v1337 = vunpack.c.l.b16 %v1298
            %v1338 = vunpack.c.l.b16 %v1299
            %v1339 = vunpack.c.l.b16 %v1300
            %v1340 = vunpack.c.l.b16 %v1301
            %v1341 = vunpack.c.l.b16 %v1302
            %v1342 = vunpack.c.l.b16 %v1303
            %v1343 = vunpack.c.l.b16 %v1304
            %v1344 = vunpack.c.l.b16 %v1305
            %v1345 = vunpack.c.l.b16 %v1306
            %v1346 = vunpack.c.l.b16 %v1307
            %v1347 = vunpack.c.l.b16 %v1308
            %v1348 = vunpack.c.l.b16 %v1309
            %v1349 = vunpack.c.l.b16 %v1310
            %v1350 = vpack.c.b16 %v1335, %v1334
            %v1351 = vpack.c.b16 %v1337, %v1336
            %v1352 = vpack.c.b16 %v1339, %v1338
            %v1353 = vpack.c.b16 %v1341, %v1340
            %v1354 = vpack.c.b16 %v1343, %v1342
            %v1355 = vpack.c.b16 %v1345, %v1344
            %v1356 = vpack.c.b16 %v1347, %v1346
            %v1357 = vpack.c.b16 %v1349, %v1348
            %1366 = vmatprep.subr.bf16.mxu0 0
            %1367 = vmatpush1.bf16.msra.mxu0 %v1350
            %1368 = vmatprep.subr.bf16.mxu0 0
            %1369 = vmatpush1.bf16.msra.mxu0 %v1351
            %1370 = vmatprep.subr.bf16.mxu0 0
            %1371 = vmatpush1.bf16.msra.mxu0 %v1352
            %1372 = vmatprep.subr.bf16.mxu0 0
            %1373 = vmatpush1.bf16.msra.mxu0 %v1353
            %1374 = vmatprep.subr.bf16.mxu0 0
            %1375 = vmatpush1.bf16.msra.mxu0 %v1354
            %1376 = vmatprep.subr.bf16.mxu0 0
            %1377 = vmatpush1.bf16.msra.mxu0 %v1355
            %1378 = vmatprep.subr.bf16.mxu0 0
            %1379 = vmatpush1.bf16.msra.mxu0 %v1356
            %1380 = vmatprep.subr.bf16.mxu0 0
            %1381 = vmatpush1.bf16.msra.mxu0 %v1357
            %1382 = vmatprep.subr.bf16.mxu0 0
            %1383 = vmatpush1.bf16.msra.mxu0 0
            %1384 = vmatprep.subr.bf16.mxu0 0
            %1385 = vmatpush1.bf16.msra.mxu0 0
            %1386 = vmatprep.subr.bf16.mxu0 0
            %1387 = vmatpush1.bf16.msra.mxu0 0
            %1388 = vmatprep.subr.bf16.mxu0 0
            %1389 = vmatpush1.bf16.msra.mxu0 0
            %1390 = vmatprep.subr.bf16.mxu0 0
            %1391 = vmatpush1.bf16.msra.mxu0 0
            %1392 = vmatprep.subr.bf16.mxu0 0
            %1393 = vmatpush1.bf16.msra.mxu0 0
            %1394 = vmatprep.subr.bf16.mxu0 0
            %1395 = vmatpush1.bf16.msra.mxu0 0
            %1396 = vmatprep.subr.bf16.mxu0 0
            %1397 = vmatpush1.bf16.msra.mxu0 0
            %1398 = vmatprep.mubr.bf16.mxu0 0
            %1399 = vmatmul.mubr.bf16.gmra.mrb[0].mxu0 %v1294
            %v1400 = vpop.f32.mrb[0].mxu0
            %v1401 = vadd.f32 %v1316, %v1400
            %v1402 = vpop.f32.mrb[0].mxu0
            %v1403 = vpop.f32.mrb[0].mxu0
            %v1404 = vpop.f32.mrb[0].mxu0
            %1405 = vdwg.mxu0
            %v1406 = vmax.f32 %v1401, 0.0
            %v1407 = vpack.c.bf16 %v1406, %v1406
            %v1408 = vld [vmem:[%s588] sm:$0xf]
            %v1409 = vld [vmem:[%s588 + $0x4] sm:$0xf]
            %v1410 = vld [vmem:[%s588 + $0x8] sm:$0xf]
            %v1411 = vld [vmem:[%s588 + $0xc] sm:$0xf]
            %v1412 = vld [vmem:[%s588 + $0x10] sm:$0xf]
            %v1413 = vld [vmem:[%s588 + $0x14] sm:$0xf]
            %v1414 = vld [vmem:[%s588 + $0x18] sm:$0xf]
            %v1415 = vld [vmem:[%s588 + $0x1c] sm:$0xf]
            %v1416 = vld [vmem:[%s588 + $0x20] sm:$0xf]
            %v1417 = vld [vmem:[%s588 + $0x24] sm:$0xf]
            %v1418 = vld [vmem:[%s588 + $0x28] sm:$0xf]
            %v1419 = vld [vmem:[%s588 + $0x2c] sm:$0xf]
            %v1420 = vld [vmem:[%s588 + $0x30] sm:$0xf]
            %v1421 = vld [vmem:[%s588 + $0x34] sm:$0xf]
            %v1422 = vld [vmem:[%s588 + $0x38] sm:$0xf]
            %v1423 = vld [vmem:[%s588 + $0x3c] sm:$0xf]
            %v1424 = vld [vmem:[%s697] sm:$0x1]
            %v1426 = vlaneseq
            %v1427 = vshrl.u32 %v1426, 7
            %v1428 = vsub.s32 0, %v1427
            %v1429 = vrot.slane %v1424, %v1428
            %v1447 = vunpack.c.l.b16 %v1408
            %v1448 = vunpack.c.l.b16 %v1409
            %v1449 = vunpack.c.l.b16 %v1410
            %v1450 = vunpack.c.l.b16 %v1411
            %v1451 = vunpack.c.l.b16 %v1412
            %v1452 = vunpack.c.l.b16 %v1413
            %v1453 = vunpack.c.l.b16 %v1414
            %v1454 = vunpack.c.l.b16 %v1415
            %v1455 = vunpack.c.l.b16 %v1416
            %v1456 = vunpack.c.l.b16 %v1417
            %v1457 = vunpack.c.l.b16 %v1418
            %v1458 = vunpack.c.l.b16 %v1419
            %v1459 = vunpack.c.l.b16 %v1420
            %v1460 = vunpack.c.l.b16 %v1421
            %v1461 = vunpack.c.l.b16 %v1422
            %v1462 = vunpack.c.l.b16 %v1423
            %v1463 = vpack.c.b16 %v1448, %v1447
            %v1464 = vpack.c.b16 %v1450, %v1449
            %v1465 = vpack.c.b16 %v1452, %v1451
            %v1466 = vpack.c.b16 %v1454, %v1453
            %v1467 = vpack.c.b16 %v1456, %v1455
            %v1468 = vpack.c.b16 %v1458, %v1457
            %v1469 = vpack.c.b16 %v1460, %v1459
            %v1470 = vpack.c.b16 %v1462, %v1461
            %1479 = vmatprep.subr.bf16.mxu0 0
            %1480 = vmatpush1.bf16.msra.mxu0 %v1463
            %1481 = vmatprep.subr.bf16.mxu0 0
            %1482 = vmatpush1.bf16.msra.mxu0 %v1464
            %1483 = vmatprep.subr.bf16.mxu0 0
            %1484 = vmatpush1.bf16.msra.mxu0 %v1465
            %1485 = vmatprep.subr.bf16.mxu0 0
            %1486 = vmatpush1.bf16.msra.mxu0 %v1466
            %1487 = vmatprep.subr.bf16.mxu0 0
            %1488 = vmatpush1.bf16.msra.mxu0 %v1467
            %1489 = vmatprep.subr.bf16.mxu0 0
            %1490 = vmatpush1.bf16.msra.mxu0 %v1468
            %1491 = vmatprep.subr.bf16.mxu0 0
            %1492 = vmatpush1.bf16.msra.mxu0 %v1469
            %1493 = vmatprep.subr.bf16.mxu0 0
            %1494 = vmatpush1.bf16.msra.mxu0 %v1470
            %1495 = vmatprep.subr.bf16.mxu0 0
            %1496 = vmatpush1.bf16.msra.mxu0 0
            %1497 = vmatprep.subr.bf16.mxu0 0
            %1498 = vmatpush1.bf16.msra.mxu0 0
            %1499 = vmatprep.subr.bf16.mxu0 0
            %1500 = vmatpush1.bf16.msra.mxu0 0
            %1501 = vmatprep.subr.bf16.mxu0 0
            %1502 = vmatpush1.bf16.msra.mxu0 0
            %1503 = vmatprep.subr.bf16.mxu0 0
            %1504 = vmatpush1.bf16.msra.mxu0 0
            %1505 = vmatprep.subr.bf16.mxu0 0
            %1506 = vmatpush1.bf16.msra.mxu0 0
            %1507 = vmatprep.subr.bf16.mxu0 0
            %1508 = vmatpush1.bf16.msra.mxu0 0
            %1509 = vmatprep.subr.bf16.mxu0 0
            %1510 = vmatpush1.bf16.msra.mxu0 0
            %1511 = vmatprep.mubr.bf16.mxu0 0
            %1512 = vmatmul.mubr.bf16.gmra.mrb[0].mxu0 %v1407
            %v1513 = vpop.f32.mrb[0].mxu0
            %v1514 = vadd.f32 %v1429, %v1513
            %v1515 = vpop.f32.mrb[0].mxu0
            %v1516 = vpop.f32.mrb[0].mxu0
            %v1517 = vpop.f32.mrb[0].mxu0
            %1518 = vdwg.mxu0
            %v1519 = vmax.f32 %v1514, 0.0
            %1520 = vst [vmem:[#allocation4] sm:$0x3] %v1519
          $region112: #{tpu_custom_call.1} parent=103 // pred_fallthru
            _
        $region104: #{tpu_custom_call.1} parent=71 // pred_fallthru
          _
        // Predicated region
        $region113: #{tpu_custom_call.1} parent=71 // pred_check
          %p1521 = pneg %p387
        $region114: #{tpu_custom_call.1} parent=71 // pred_check_branch
          %1523 = sbr.rel (%p1521) target = $region116
        $region115: #{tpu_custom_call.1} parent=71 // pred_region
          %s1525 = ssub.s32 256, 256
          %1526 = vsyncadd [#allocation7], %s1525
          %s1527 = sshll.u32 [#allocation13], 4
          %s1528 = int_to_ptr.vmem [resolvable:$true] %s1527
          %1533 = dma.vmem_to_hbm [thread:$0]  %s1528, 256, %s13, [#allocation7], 128, 128, 8
        $region116: #{tpu_custom_call.1} parent=71 // pred_fallthru
          _
        // Predicated region
        $region117: #{tpu_custom_call.1} parent=71 // pred_check
          %p1534 = pneg %p387
        $region118: #{tpu_custom_call.1} parent=71 // pred_check_branch
          %1536 = sbr.rel (%p1534) target = $region120
        $region119: #{tpu_custom_call.1} parent=71 // pred_region
          %1537 = dma.done [#allocation7], 256
        $region120: #{tpu_custom_call.1} parent=71 // pred_fallthru
          _
      $region72: #{tpu_custom_call.1} parent=5 // pred_fallthru
        _
      %p1538 = scmp.le.s32.totalorder 2, %s29
      // Predicated region
      $region121: #{tpu_custom_call.1} parent=5 // pred_check
        %p1539 = pneg %p1538
      $region122: #{tpu_custom_call.1} parent=5 // pred_check_branch
        %1541 = sbr.rel (%p1539) target = $region124
      $region123: #{tpu_custom_call.1} parent=5 // pred_region
        %s1542 = ssub.s32 %s29, 2
      $region124: #{tpu_custom_call.1} parent=5 // pred_fallthru
        _
    $region6: #{tpu_custom_call.1} parent=1 // loop_footer
      %s33 = sadd.s32 1, %s29
    $region7: #{tpu_custom_call.1} parent=1 // loop_footer_branch
      %28 = sbr.rel target = $region3
    $region8: #{tpu_custom_call.1} parent=1 // loop_exit
      _
    %1543 = vsyncpa [#allocation6], 1
    %s1544 = scalar_lea.sflag [#allocation6], 1
    %1545 = vsyncpa %s1544, 1
    %1546 = vsyncpa [#allocation9], 1
    %s1547 = scalar_lea.sflag [#allocation9], 1
    %1548 = vsyncpa %s1547, 1
    %1549 = vsyncpa [#allocation12], 1
    %s1550 = scalar_lea.sflag [#allocation12], 1
    %1551 = vsyncpa %s1550, 1
    %1552 = vsyncpa [#allocation7], 1
    %s1553 = scalar_lea.sflag [#allocation7], 1
    %1554 = vsyncpa %s1553, 1

</llo_original>
